<compile_context>
chip_gen: v5e
topology: v5e:2x2
jax: 0.10.0
libtpu: 0.0.40
codegen_flags: <defaults>
</compile_context>

<pallas_src>
import functools

import jax
import jax.numpy as jnp
from jax import lax
from jax.experimental import pallas as pl
from jax.experimental.pallas import tpu as pltpu


def _conv3x1(src_ref, start, rows, w_ref, k, im2col):
    """(3,1) conv over `rows` output rows as MXU matmul(s), f32 accumulation.

    src_ref rows [start, start + rows + 2) hold the (already zero-padded) input
    window; w_ref is (3*k, out) packed rows = [tap0 (k), tap1 (k), tap2 (k)] with
    the BN scale already folded in.  Returns (rows * W, out) f32.
    """
    w = src_ref.shape[1]
    if im2col:
        xs = jnp.concatenate(
            [src_ref[pl.ds(start + t, rows)] for t in range(3)], axis=-1)
        return jnp.dot(xs.reshape(rows * w, 3 * k), w_ref[...],
                       preferred_element_type=jnp.float32)
    acc = None
    for t in range(3):
        xt = src_ref[pl.ds(start + t, rows)].reshape(rows * w, k)
        part = jnp.dot(xt, w_ref[t * k:(t + 1) * k],
                       preferred_element_type=jnp.float32)
        acc = part if acc is None else acc + part
    return acc


def _basic_block_kernel(x_ref, w1_ref, b1_ref, w2_ref, b2_ref, o_ref,
                        xp_ref, y_ref, *, im2col):
    # x_ref : (1, H, W, C)   unpadded input (original dtype), resident per image
    # w1_ref: (3*C, P)       BN1-scale-folded weights (compute dtype)
    # b1_ref: (1, P)         folded BN1 shift (f32)
    # w2_ref: (3*P, P)       BN2-scale-folded weights (compute dtype)
    # b2_ref: (1, P)         folded BN2 shift (f32)
    # o_ref : (1, TH, W, P)  output tile
    # xp_ref: (H+4, W, C)    scratch: zero-padded compute-dtype copy of the image
    # y_ref : (TH+2, W, P)   scratch: conv1 output (incl. conv2 halo rows)
    i = pl.program_id(1)
    n_tiles = pl.num_programs(1)
    TH, W, P = o_ref.shape[1], o_ref.shape[2], o_ref.shape[3]
    H, C = x_ref.shape[1], x_ref.shape[3]
    cdt = xp_ref.dtype

    # Once per image: build the zero-padded, compute-dtype image copy in VMEM.
    @pl.when(i == 0)
    def _():
        xp_ref[0:2] = jnp.zeros((2, W, C), cdt)
        xp_ref[2:H + 2] = x_ref[0].astype(cdt)
        xp_ref[H + 2:H + 4] = jnp.zeros((2, W, C), cdt)

    start = pl.multiple_of(i * TH, TH)

    # ---- conv1 (BN1 scale folded) + bias + ReLU ------------------------------
    # Produces TH+2 rows (1-row halo each side needed by conv2).
    y = _conv3x1(xp_ref, start, TH + 2, w1_ref, C, im2col)       # (rows, P) f32
    y = jnp.maximum(y + b1_ref[...], 0.0)
    y_ref[...] = y.reshape(TH + 2, W, P).astype(cdt)

    # conv2's zero padding: y's halo rows at global rows -1 and H must be zero.
    @pl.when(i == 0)
    def _():
        y_ref[0] = jnp.zeros((W, P), cdt)

    @pl.when(i == n_tiles - 1)
    def _():
        y_ref[TH + 1] = jnp.zeros((W, P), cdt)

    # ---- conv2 (BN2 scale folded) + bias -------------------------------------
    z = _conv3x1(y_ref, 0, TH, w2_ref, P, im2col)                 # (TH*W, P) f32
    z = z.reshape(TH, W, P) + b2_ref[...]

    # ---- identity residual (full precision, straight from x_ref) + ReLU ------
    ident = x_ref[0, pl.ds(start, TH), :, :].astype(jnp.float32)
    o_ref[0] = jnp.maximum(z + ident, 0.0).astype(o_ref.dtype)


def _default_vmem_limit_bytes():
    try:
        cap = getattr(pltpu.get_tpu_info(), "vmem_capacity_bytes", 64 * 1024 * 1024)
    except Exception:
        cap = 64 * 1024 * 1024
    # ~32 MiB on 64-MiB chips (v7x); ~80 MiB on 128-MiB chips (v5e/v6e).
    return 80 * 1024 * 1024 if cap >= 100 * 1024 * 1024 else 32 * 1024 * 1024


def _default_im2col():
    # v5e's MXU is 128 deep: per-tap (contraction = C) matmuls already fill it and
    # avoid the 3x im2col copy.  v6e/v7x (256 deep) benefit from the 3C contraction.
    try:
        kind = jax.devices()[0].device_kind.lower()
        return not ("v5" in kind or "v4" in kind)
    except Exception:
        return True


def _tile_vmem_bytes(th, w, c, p, c_item, o_item):
    rows1 = (th + 2) * w            # conv1 output rows (incl. conv2 halo)
    rows2 = th * w                  # conv2 / output rows
    return int(rows1 * 3 * c * c_item        # conv1 im2col operand
               + rows1 * p * 4               # conv1 f32 accumulator
               + rows1 * p * c_item          # y scratch
               + rows2 * 3 * p * c_item      # conv2 im2col operand
               + 3 * rows2 * p * 4           # conv2 f32 acc + identity + epilogue
               + 2 * rows2 * p * o_item)     # double-buffered output block


def _pick_block_h(H, W, C, P, x_item, c_item, o_item, vmem_limit):
    resident = (2 * H * W * C * x_item            # double-buffered input image block
                + (H + 4) * W * C * c_item        # padded compute-dtype image scratch
                + (3 * C * P + 3 * P * P + 2 * P) * 4)
    budget = max(vmem_limit // 2 - resident, 1 << 20)
    divisors = [d for d in range(1, H + 1) if H % d == 0]
    fits = [d for d in divisors if _tile_vmem_bytes(d, W, C, P, c_item, o_item) <= budget]
    if not fits:
        return divisors[0]
    target = max(8, -(-2048 // max(W, 1)))        # ~2048 matmul rows per grid step
    under = [d for d in fits if d <= target]
    best = under[-1] if under else fits[0]
    if best * W < 512:                            # guard tiny matmul M (e.g. prime H)
        bigger = [d for d in fits if d * W >= 512]
        if bigger:
            best = bigger[0]
    return best


def basic_block_pallas_nhwc(x_nhwc, params, *, eps=1e-5, block_h=None,
                            compute_dtype=jnp.bfloat16, out_dtype=None,
                            im2col=None, vmem_limit_bytes=None):
    """Native NHWC entry point (no layout transposes).  x_nhwc: (N, H, W, C)."""
    w1, g1, be1, rm1, rv1, w2, g2, be2, rm2, rv2 = params
    N, H, W, C = x_nhwc.shape
    P = w1.shape[0]
    assert w1.shape == (P, C, 3, 1) and w2.shape == (P, P, 3, 1)
    assert C == P, "identity residual requires inplanes == planes"

    if out_dtype is None:
        out_dtype = x_nhwc.dtype
    if im2col is None:
        im2col = _default_im2col()
    if vmem_limit_bytes is None:
        vmem_limit_bytes = _default_vmem_limit_bytes()

    # Fold BN (inference mode, running stats) into per-channel scale/shift, then fold
    # the scale into the weights (in f32, before the compute-dtype cast).
    s1 = (g1 / jnp.sqrt(rv1 + eps)).astype(jnp.float32)
    b1 = (be1 - rm1 * s1).astype(jnp.float32)
    s2 = (g2 / jnp.sqrt(rv2 + eps)).astype(jnp.float32)
    b2 = (be2 - rm2 * s2).astype(jnp.float32)

    # PyTorch (O, I, 3, 1) -> im2col packed (3*I, O), rows ordered tap0, tap1, tap2.
    w1_p = (jnp.transpose(w1[:, :, :, 0], (2, 1, 0)).reshape(3 * C, P)
            .astype(jnp.float32) * s1[None, :]).astype(compute_dtype)
    w2_p = (jnp.transpose(w2[:, :, :, 0], (2, 1, 0)).reshape(3 * P, P)
            .astype(jnp.float32) * s2[None, :]).astype(compute_dtype)

    x_item = jnp.dtype(x_nhwc.dtype).itemsize
    c_item = jnp.dtype(compute_dtype).itemsize
    o_item = jnp.dtype(out_dtype).itemsize

    if block_h is None:
        block_h = _pick_block_h(H, W, C, P, x_item, c_item, o_item, vmem_limit_bytes)
    assert H % block_h == 0, "H must be divisible by block_h"
    n_tiles = H // block_h

    flops = 2 * 2 * N * H * W * (3 * C) * P                       # two convs
    bytes_acc = (N * H * W * C * x_item                           # input (read once)
                 + N * H * W * P * o_item                         # output
                 + (3 * C * P + 3 * P * P) * c_item)              # weights

    kernel = functools.partial(_basic_block_kernel, im2col=im2col)

    out = pl.pallas_call(
        kernel,
        out_shape=jax.ShapeDtypeStruct((N, H, W, P), out_dtype),
        grid=(N, n_tiles),
        in_specs=[
            # Whole unpadded image: constant along the H-tile axis -> DMA'd once per
            # image and kept resident; halos/padding are built in-kernel.
            pl.BlockSpec((1, H, W, C), lambda n, i: (n, 0, 0, 0)),
            # Weights / folded BN biases: constant index_map -> resident.
            pl.BlockSpec((3 * C, P), lambda n, i: (0, 0)),
            pl.BlockSpec((1, P), lambda n, i: (0, 0)),
            pl.BlockSpec((3 * P, P), lambda n, i: (0, 0)),
            pl.BlockSpec((1, P), lambda n, i: (0, 0)),
        ],
        out_specs=pl.BlockSpec((1, block_h, W, P), lambda n, i: (n, i, 0, 0)),
        scratch_shapes=[
            pltpu.VMEM((H + 4, W, C), compute_dtype),        # padded image copy
            pltpu.VMEM((block_h + 2, W, P), compute_dtype),  # conv1 output + halos
        ],
        compiler_params=pltpu.CompilerParams(
            dimension_semantics=("parallel", "arbitrary"),
            vmem_limit_bytes=int(vmem_limit_bytes)),
        cost_estimate=pl.CostEstimate(flops=int(flops), transcendentals=0,
                                      bytes_accessed=int(bytes_acc)),
    )(x_nhwc, w1_p, b1.reshape(1, P), w2_p, b2.reshape(1, P))
    return out


def basic_block_pallas(x_nchw, params, **kwargs):
    """NCHW compatibility wrapper (testing only).  Use basic_block_pallas_nhwc
    end-to-end in production: these transposes are extra HBM round trips."""
    x_nhwc = jnp.transpose(x_nchw, (0, 2, 3, 1))
    out = basic_block_pallas_nhwc(x_nhwc, params, **kwargs)
    return jnp.transpose(out, (0, 3, 1, 2))


def basic_block_ref(x_nchw, params, eps=1e-5, compute_dtype=jnp.float32):
    """Plain-JAX reference reproducing the PyTorch forward (eval-mode BN).  The conv
    inputs are cast to compute_dtype with f32 accumulation (mirrors the kernel's
    bf16-fed / f32-accumulated MXU path); the identity stays full precision."""
    w1, g1, be1, rm1, rv1, w2, g2, be2, rm2, rv2 = params
    cd = compute_dtype

    def conv(x, w):
        return lax.conv_general_dilated(
            x.astype(cd), w.astype(cd), window_strides=(1, 1),
            padding=((1, 1), (0, 0)),
            dimension_numbers=("NCHW", "OIHW", "NCHW"),
            preferred_element_type=jnp.float32,
            precision=lax.Precision.HIGHEST)

    def bn(x, g, b, m, v):
        g, b, m, v = (t[None, :, None, None] for t in (g, b, m, v))
        return (x - m) / jnp.sqrt(v + eps) * g + b

    identity = x_nchw.astype(jnp.float32)
    out = jax.nn.relu(bn(conv(x_nchw, w1), g1, be1, rm1, rv1))
    out = bn(conv(out, w2), g2, be2, rm2, rv2)
    return jax.nn.relu(out + identity)


if __name__ == "__main__":
    key = jax.random.PRNGKey(0)
    # Small but TPU-friendly shapes: lane-dense channels (C = P = 128), W multiple of
    # the sublane count, several possible H tiles per image.
    N, C, H, W = 2, 128, 64, 8
    P = C

    ks = jax.random.split(key, 11)
    x_nchw = jax.random.normal(ks[0], (N, C, H, W), jnp.float32)
    x_nhwc = jnp.transpose(x_nchw, (0, 2, 3, 1))

    wscale = (1.0 / (3 * C)) ** 0.5
    w1 = jax.random.normal(ks[1], (P, C, 3, 1), jnp.float32) * wscale
    g1 = 1.0 + 0.1 * jax.random.normal(ks[2], (P,), jnp.float32)
    be1 = 0.1 * jax.random.normal(ks[3], (P,), jnp.float32)
    rm1 = 0.1 * jax.random.normal(ks[4], (P,), jnp.float32)
    rv1 = jnp.abs(1.0 + 0.1 * jax.random.normal(ks[5], (P,), jnp.float32))

    w2 = jax.random.normal(ks[6], (P, P, 3, 1), jnp.float32) * wscale
    g2 = 1.0 + 0.1 * jax.random.normal(ks[7], (P,), jnp.float32)
    be2 = 0.1 * jax.random.normal(ks[8], (P,), jnp.float32)
    rm2 = 0.1 * jax.random.normal(ks[9], (P,), jnp.float32)
    rv2 = jnp.abs(1.0 + 0.1 * jax.random.normal(ks[10], (P,), jnp.float32))

    params = (w1, g1, be1, rm1, rv1, w2, g2, be2, rm2, rv2)

    ref_f32 = basic_block_ref(x_nchw, params, compute_dtype=jnp.float32)
    ref_f32_nhwc = jnp.transpose(ref_f32, (0, 2, 3, 1))

    # 1) f32 exact-semantics check, multi-tile (exercises the halo / boundary logic).
    out = basic_block_pallas_nhwc(x_nhwc, params, block_h=16,
                                  compute_dtype=jnp.float32, im2col=True)
    out = jax.block_until_ready(out)
    assert out.shape == (N, H, W, P)
    assert jnp.allclose(out, ref_f32_nhwc, atol=1e-3, rtol=1e-3), (
        f"f32 im2col path: max abs diff {jnp.max(jnp.abs(out - ref_f32_nhwc))}")

    # 2) f32 per-tap accumulating-matmul path (v5e variant), auto block_h.
    out_pt = basic_block_pallas_nhwc(x_nhwc, params, compute_dtype=jnp.float32,
                                     im2col=False)
    out_pt = jax.block_until_ready(out_pt)
    assert jnp.allclose(out_pt, ref_f32_nhwc, atol=1e-3, rtol=1e-3), (
        f"f32 per-tap path: max abs diff {jnp.max(jnp.abs(out_pt - ref_f32_nhwc))}")

    # 3) Production path: bf16-fed MXU (BN scale folded into bf16 weights), f32
    #    accumulation/epilogue, full-precision identity residual, bf16 output.
    ref_bf = basic_block_ref(x_nchw, params, compute_dtype=jnp.bfloat16)
    ref_bf_nhwc = jnp.transpose(ref_bf, (0, 2, 3, 1))
    out_bf = basic_block_pallas_nhwc(x_nhwc, params, compute_dtype=jnp.bfloat16,
                                     out_dtype=jnp.bfloat16)
    out_bf = jax.block_until_ready(out_bf)
    diff = jnp.max(jnp.abs(out_bf.astype(jnp.float32) - ref_bf_nhwc))
    assert jnp.allclose(out_bf.astype(jnp.float32), ref_bf_nhwc,
                        atol=4e-2, rtol=4e-2), f"bf16 path: max abs diff {diff}"

    print("KERNEL_OK")
</pallas_src>

<mosaic_0001>
module attributes {stable_mosaic.version = 11 : i64} {
  func.func @_basic_block_kernel(%arg0: i32, %arg1: i32, %arg2: memref<1x64x8x128xf32, #tpu.memory_space<vmem>>, %arg3: memref<384x128xf32, #tpu.memory_space<vmem>>, %arg4: memref<1x128xf32, #tpu.memory_space<vmem>>, %arg5: memref<384x128xf32, #tpu.memory_space<vmem>>, %arg6: memref<1x128xf32, #tpu.memory_space<vmem>>, %arg7: memref<1x16x8x128xf32, #tpu.memory_space<vmem>>, %arg8: memref<68x8x128xf32, #tpu.memory_space<vmem>>, %arg9: memref<18x8x128xf32, #tpu.memory_space<vmem>>) attributes {dimension_semantics = [#tpu.dimension_semantics<parallel>, #tpu.dimension_semantics<arbitrary>], iteration_bounds = array<i64: 2, 4>, scalar_prefetch = 0 : i64, scratch_operands = 2 : i64, tpu.core_type = #tpu.core_type<tc>, window_params = [{transform_indices = @transform_0, window_bounds = array<i64: 1, 64, 8, 128>}, {pipeline_mode = #tpu.pipeline_mode<synchronous>, transform_indices = @transform_1, window_bounds = array<i64: 384, 128>}, {pipeline_mode = #tpu.pipeline_mode<synchronous>, transform_indices = @transform_2, window_bounds = array<i64: 1, 128>}, {pipeline_mode = #tpu.pipeline_mode<synchronous>, transform_indices = @transform_3, window_bounds = array<i64: 384, 128>}, {pipeline_mode = #tpu.pipeline_mode<synchronous>, transform_indices = @transform_4, window_bounds = array<i64: 1, 128>}, {transform_indices = @transform_5, window_bounds = array<i64: 1, 16, 8, 128>}]} {
    %c0_i32 = arith.constant 0 : i32
    %0 = arith.cmpi eq, %arg1, %c0_i32 : i32
    %1 = arith.extui %0 : i1 to i32
    %c0_i32_0 = arith.constant 0 : i32
    %2 = arith.cmpi ne, %1, %c0_i32_0 : i32
    scf.if %2 {
      %cst_38 = arith.constant 0.000000e+00 : f32
      %52 = vector.broadcast %cst_38 : f32 to vector<2x8x128xf32>
      %c0_39 = arith.constant 0 : index
      %c0_40 = arith.constant 0 : index
      %c0_41 = arith.constant 0 : index
      %53 = vector.load %arg8[%c0_39, %c0_40, %c0_41] : memref<68x8x128xf32, #tpu.memory_space<vmem>>, vector<2x8x128xf32>
      tpu.vector_store %arg8[%c0_39, %c0_40, %c0_41], %52 {strides = array<i32>} : memref<68x8x128xf32, #tpu.memory_space<vmem>>, vector<2x8x128xf32>,
      %c0_42 = arith.constant 0 : index
      %c0_43 = arith.constant 0 : index
      %c0_44 = arith.constant 0 : index
      %c0_45 = arith.constant 0 : index
      %54 = vector.load %arg2[%c0_42, %c0_43, %c0_44, %c0_45] : memref<1x64x8x128xf32, #tpu.memory_space<vmem>>, vector<1x64x8x128xf32>
      %55 = vector.shape_cast %54 : vector<1x64x8x128xf32> to vector<64x8x128xf32>
      %c2_46 = arith.constant 2 : index
      %c0_47 = arith.constant 0 : index
      %c0_48 = arith.constant 0 : index
      %56 = vector.load %arg8[%c2_46, %c0_47, %c0_48] : memref<68x8x128xf32, #tpu.memory_space<vmem>>, vector<64x8x128xf32>
      tpu.vector_store %arg8[%c2_46, %c0_47, %c0_48], %55 {strides = array<i32>} : memref<68x8x128xf32, #tpu.memory_space<vmem>>, vector<64x8x128xf32>,
      %cst_49 = arith.constant 0.000000e+00 : f32
      %57 = vector.broadcast %cst_49 : f32 to vector<2x8x128xf32>
      %c66 = arith.constant 66 : index
      %c0_50 = arith.constant 0 : index
      %c0_51 = arith.constant 0 : index
      %58 = vector.load %arg8[%c66, %c0_50, %c0_51] : memref<68x8x128xf32, #tpu.memory_space<vmem>>, vector<2x8x128xf32>
      tpu.vector_store %arg8[%c66, %c0_50, %c0_51], %57 {strides = array<i32>} : memref<68x8x128xf32, #tpu.memory_space<vmem>>, vector<2x8x128xf32>,
    } else {
    }
    %c16_i32 = arith.constant 16 : i32
    %3 = arith.muli %arg1, %c16_i32 : i32
    %4 = tpu.assume_multiple %3, 16 : i32
    %c0_i32_1 = arith.constant 0 : i32
    %5 = arith.addi %4, %c0_i32_1 : i32
    %6 = arith.index_cast %5 : i32 to index
    %c0 = arith.constant 0 : index
    %c0_2 = arith.constant 0 : index
    %7 = vector.load %arg8[%6, %c0, %c0_2] : memref<68x8x128xf32, #tpu.memory_space<vmem>>, vector<18x8x128xf32>
    %c1_i32 = arith.constant 1 : i32
    %8 = arith.addi %4, %c1_i32 : i32
    %9 = arith.index_cast %8 : i32 to index
    %c0_3 = arith.constant 0 : index
    %c0_4 = arith.constant 0 : index
    %10 = vector.load %arg8[%9, %c0_3, %c0_4] : memref<68x8x128xf32, #tpu.memory_space<vmem>>, vector<18x8x128xf32>
    %c2_i32 = arith.constant 2 : i32
    %11 = arith.addi %4, %c2_i32 : i32
    %12 = arith.index_cast %11 : i32 to index
    %c0_5 = arith.constant 0 : index
    %c0_6 = arith.constant 0 : index
    %13 = vector.load %arg8[%12, %c0_5, %c0_6] : memref<68x8x128xf32, #tpu.memory_space<vmem>>, vector<18x8x128xf32>
    %14 = tpu.concatenate %7, %10, %13 in 2 : vector<18x8x128xf32>, vector<18x8x128xf32>, vector<18x8x128xf32> -> vector<18x8x384xf32>
    %15 = vector.shape_cast %14 : vector<18x8x384xf32> to vector<144x384xf32>
    %c0_7 = arith.constant 0 : index
    %c0_8 = arith.constant 0 : index
    %16 = vector.load %arg3[%c0_7, %c0_8] : memref<384x128xf32, #tpu.memory_space<vmem>>, vector<384x128xf32>
    %cst = arith.constant dense<0.000000e+00> : vector<144x128xf32>
    %17 = tpu.matmul %15, %16, %cst {dimension_numbers = #tpu.dot_dimension_numbers<[1], [0], [0], [1], [0, 0, 1, 1], [], []>} : vector<144x384xf32>, vector<384x128xf32>, vector<144x128xf32> -> vector<144x128xf32>
    %c0_9 = arith.constant 0 : index
    %c0_10 = arith.constant 0 : index
    %18 = vector.load %arg4[%c0_9, %c0_10] : memref<1x128xf32, #tpu.memory_space<vmem>>, vector<1x128xf32>
    %19 = vector.broadcast %18 : vector<1x128xf32> to vector<144x128xf32>
    %20 = arith.addf %17, %19 : vector<144x128xf32>
    %cst_11 = arith.constant 0.000000e+00 : f32
    %21 = vector.broadcast %cst_11 : f32 to vector<144x128xf32>
    %22 = arith.maximumf %20, %21 : vector<144x128xf32>
    %23 = vector.shape_cast %22 : vector<144x128xf32> to vector<18x8x128xf32>
    %c0_12 = arith.constant 0 : index
    %c0_13 = arith.constant 0 : index
    %c0_14 = arith.constant 0 : index
    %24 = vector.load %arg9[%c0_12, %c0_13, %c0_14] : memref<18x8x128xf32, #tpu.memory_space<vmem>>, vector<18x8x128xf32>
    tpu.vector_store %arg9[%c0_12, %c0_13, %c0_14], %23 {strides = array<i32>} : memref<18x8x128xf32, #tpu.memory_space<vmem>>, vector<18x8x128xf32>,
    %c0_i32_15 = arith.constant 0 : i32
    %25 = arith.cmpi eq, %arg1, %c0_i32_15 : i32
    %26 = arith.extui %25 : i1 to i32
    %c0_i32_16 = arith.constant 0 : i32
    %27 = arith.cmpi ne, %26, %c0_i32_16 : i32
    scf.if %27 {
      %cst_38 = arith.constant 0.000000e+00 : f32
      %52 = vector.broadcast %cst_38 : f32 to vector<8x128xf32>
      %c0_39 = arith.constant 0 : index
      %c0_40 = arith.constant 0 : index
      %c0_41 = arith.constant 0 : index
      %53 = vector.load %arg9[%c0_39, %c0_40, %c0_41] : memref<18x8x128xf32, #tpu.memory_space<vmem>>, vector<1x8x128xf32>
      %54 = vector.shape_cast %53 : vector<1x8x128xf32> to vector<8x128xf32>
      %55 = vector.shape_cast %52 : vector<8x128xf32> to vector<1x8x128xf32>
      tpu.vector_store %arg9[%c0_39, %c0_40, %c0_41], %55 {strides = array<i32>} : memref<18x8x128xf32, #tpu.memory_space<vmem>>, vector<1x8x128xf32>,
    } else {
    }
    %c3_i32 = arith.constant 3 : i32
    %28 = arith.cmpi eq, %arg1, %c3_i32 : i32
    %29 = arith.extui %28 : i1 to i32
    %c0_i32_17 = arith.constant 0 : i32
    %30 = arith.cmpi ne, %29, %c0_i32_17 : i32
    scf.if %30 {
      %cst_38 = arith.constant 0.000000e+00 : f32
      %52 = vector.broadcast %cst_38 : f32 to vector<8x128xf32>
      %c17 = arith.constant 17 : index
      %c0_39 = arith.constant 0 : index
      %c0_40 = arith.constant 0 : index
      %53 = vector.load %arg9[%c17, %c0_39, %c0_40] : memref<18x8x128xf32, #tpu.memory_space<vmem>>, vector<1x8x128xf32>
      %54 = vector.shape_cast %53 : vector<1x8x128xf32> to vector<8x128xf32>
      %55 = vector.shape_cast %52 : vector<8x128xf32> to vector<1x8x128xf32>
      tpu.vector_store %arg9[%c17, %c0_39, %c0_40], %55 {strides = array<i32>} : memref<18x8x128xf32, #tpu.memory_space<vmem>>, vector<1x8x128xf32>,
    } else {
    }
    %c0_18 = arith.constant 0 : index
    %c0_19 = arith.constant 0 : index
    %c0_20 = arith.constant 0 : index
    %31 = vector.load %arg9[%c0_18, %c0_19, %c0_20] : memref<18x8x128xf32, #tpu.memory_space<vmem>>, vector<16x8x128xf32>
    %c1 = arith.constant 1 : index
    %c0_21 = arith.constant 0 : index
    %c0_22 = arith.constant 0 : index
    %32 = vector.load %arg9[%c1, %c0_21, %c0_22] : memref<18x8x128xf32, #tpu.memory_space<vmem>>, vector<16x8x128xf32>
    %c2 = arith.constant 2 : index
    %c0_23 = arith.constant 0 : index
    %c0_24 = arith.constant 0 : index
    %33 = vector.load %arg9[%c2, %c0_23, %c0_24] : memref<18x8x128xf32, #tpu.memory_space<vmem>>, vector<16x8x128xf32>
    %34 = tpu.concatenate %31, %32, %33 in 2 : vector<16x8x128xf32>, vector<16x8x128xf32>, vector<16x8x128xf32> -> vector<16x8x384xf32>
    %35 = vector.shape_cast %34 : vector<16x8x384xf32> to vector<128x384xf32>
    %c0_25 = arith.constant 0 : index
    %c0_26 = arith.constant 0 : index
    %36 = vector.load %arg5[%c0_25, %c0_26] : memref<384x128xf32, #tpu.memory_space<vmem>>, vector<384x128xf32>
    %cst_27 = arith.constant dense<0.000000e+00> : vector<128x128xf32>
    %37 = tpu.matmul %35, %36, %cst_27 {dimension_numbers = #tpu.dot_dimension_numbers<[1], [0], [0], [1], [0, 0, 1, 1], [], []>} : vector<128x384xf32>, vector<384x128xf32>, vector<128x128xf32> -> vector<128x128xf32>
    %38 = vector.shape_cast %37 : vector<128x128xf32> to vector<16x8x128xf32>
    %c0_28 = arith.constant 0 : index
    %c0_29 = arith.constant 0 : index
    %39 = vector.load %arg6[%c0_28, %c0_29] : memref<1x128xf32, #tpu.memory_space<vmem>>, vector<1x128xf32>
    %40 = vector.shape_cast %39 : vector<1x128xf32> to vector<1x1x128xf32>
    %41 = vector.broadcast %40 : vector<1x1x128xf32> to vector<16x8x128xf32>
    %42 = arith.addf %38, %41 : vector<16x8x128xf32>
    %c0_30 = arith.constant 0 : index
    %43 = arith.index_cast %4 : i32 to index
    %c0_31 = arith.constant 0 : index
    %c0_32 = arith.constant 0 : index
    %44 = vector.load %arg2[%c0_30, %43, %c0_31, %c0_32] : memref<1x64x8x128xf32, #tpu.memory_space<vmem>>, vector<1x16x8x128xf32>
    %45 = vector.shape_cast %44 : vector<1x16x8x128xf32> to vector<16x8x128xf32>
    %46 = arith.addf %42, %45 : vector<16x8x128xf32>
    %cst_33 = arith.constant 0.000000e+00 : f32
    %47 = vector.broadcast %cst_33 : f32 to vector<16x8x128xf32>
    %48 = arith.maximumf %46, %47 : vector<16x8x128xf32>
    %c0_34 = arith.constant 0 : index
    %c0_35 = arith.constant 0 : index
    %c0_36 = arith.constant 0 : index
    %c0_37 = arith.constant 0 : index
    %49 = vector.load %arg7[%c0_34, %c0_35, %c0_36, %c0_37] : memref<1x16x8x128xf32, #tpu.memory_space<vmem>>, vector<1x16x8x128xf32>
    %50 = vector.shape_cast %49 : vector<1x16x8x128xf32> to vector<16x8x128xf32>
    %51 = vector.shape_cast %48 : vector<16x8x128xf32> to vector<1x16x8x128xf32>
    tpu.vector_store %arg7[%c0_34, %c0_35, %c0_36, %c0_37], %51 {strides = array<i32>} : memref<1x16x8x128xf32, #tpu.memory_space<vmem>>, vector<1x16x8x128xf32>,
    return
  }
  func.func @transform_0(%arg0: i32, %arg1: i32) -> (i32, i32, i32, i32) {
    %c0_i32 = arith.constant 0 : i32
    %c0_i32_0 = arith.constant 0 : i32
    %c0_i32_1 = arith.constant 0 : i32
    %c0_i32_2 = arith.constant 0 : i32
    return %arg0, %c0_i32, %c0_i32_0, %c0_i32_1 : i32, i32, i32, i32
  }
  func.func @transform_1(%arg0: i32, %arg1: i32) -> (i32, i32) {
    %c0_i32 = arith.constant 0 : i32
    %c0_i32_0 = arith.constant 0 : i32
    %c0_i32_1 = arith.constant 0 : i32
    return %c0_i32, %c0_i32_0 : i32, i32
  }
  func.func @transform_2(%arg0: i32, %arg1: i32) -> (i32, i32) {
    %c0_i32 = arith.constant 0 : i32
    %c0_i32_0 = arith.constant 0 : i32
    %c0_i32_1 = arith.constant 0 : i32
    return %c0_i32, %c0_i32_0 : i32, i32
  }
  func.func @transform_3(%arg0: i32, %arg1: i32) -> (i32, i32) {
    %c0_i32 = arith.constant 0 : i32
    %c0_i32_0 = arith.constant 0 : i32
    %c0_i32_1 = arith.constant 0 : i32
    return %c0_i32, %c0_i32_0 : i32, i32
  }
  func.func @transform_4(%arg0: i32, %arg1: i32) -> (i32, i32) {
    %c0_i32 = arith.constant 0 : i32
    %c0_i32_0 = arith.constant 0 : i32
    %c0_i32_1 = arith.constant 0 : i32
    return %c0_i32, %c0_i32_0 : i32, i32
  }
  func.func @transform_5(%arg0: i32, %arg1: i32) -> (i32, i32, i32, i32) {
    %c0_i32 = arith.constant 0 : i32
    %c0_i32_0 = arith.constant 0 : i32
    %c0_i32_1 = arith.constant 0 : i32
    return %arg0, %arg1, %c0_i32, %c0_i32_0 : i32, i32, i32, i32
  }
}

</mosaic_0001>

<llo_original>
// kernel: tpu_custom_call.1
$region0: #{tpu_custom_call.1}
  #allocation0 [shape = 'u32[]', space=smem, size = 0x4, offset = 0x4, fixed_abs, tag = 'smem constant byte address 0x4 - core index']
  #allocation1 [shape = 'u32[72,128]{1,0:T(1,128)}', space=vmem, size = 0x9000, scoped, tag = 'internal scratch']
  #allocation2 [shape = 'f32[68,8,128]{2,1,0:T(8,128)}', space=vmem, size = 0x44000, scoped, tag = 'scratch operand']
  #allocation3 [shape = 'f32[18,8,128]{2,1,0:T(8,128)}', space=vmem, size = 0x12000, scoped, tag = 'scratch operand']
  %s0 = inlined_call_operand.hbm [shape: f32[2,64,8,128], index: 0, kind: input, shape index: {}]
  %s1 = inlined_call_operand.hbm [shape: f32[384,128], index: 1, kind: input, shape index: {}]
  %s2 = inlined_call_operand.vmem [shape: f32[1,128], index: 2, kind: input, shape index: {}]
  %s3 = inlined_call_operand.hbm [shape: f32[384,128], index: 3, kind: input, shape index: {}]
  %s4 = inlined_call_operand.vmem [shape: f32[1,128], index: 4, kind: input, shape index: {}]
  %s5 = inlined_call_operand.hbm [shape: f32[2,64,8,128], index: 5, kind: output, shape index: {}]
  %s6 = sld [smem:[#allocation0]]
  $region77: #{tpu_custom_call.1} parent=0
    _
  %s8 = ssub.s32 1, %s6
  %s9 = scalar_select 0, %s8, %s6
  $region1: #{tpu_custom_call.1} parent=0
    #allocation4 [shape = 'u8[524288]{0}', space=vmem, size = 0x80000, scoped, tag = 'input window, operand 0']
    #allocation5 [shape = 's32[2]{0}', space=sflag, size = 0x8, scoped, tag = 'scoped memory for tpu_custom_call.1']
    #allocation6 [shape = 's32[2]{0}', space=sflag, size = 0x8, scoped, tag = 'scoped memory for tpu_custom_call.1']
    #allocation7 [shape = 'u8[196608]{0}', space=vmem, size = 0x30000, scoped, tag = 'input window, operand 1, single buffered']
    #allocation8 [shape = 's32[1]{0}', space=sflag, size = 0x4, scoped, tag = 'scoped memory for tpu_custom_call.1']
    #allocation9 [shape = 'u8[196608]{0}', space=vmem, size = 0x30000, scoped, tag = 'input window, operand 3, single buffered']
    #allocation10 [shape = 'u8[131072]{0}', space=vmem, size = 0x20000, scoped, tag = 'output window, operand 0']
    %10 = vsyncpa [#allocation5], 0
    %s11 = scalar_lea.sflag [#allocation5], 1
    %12 = vsyncpa %s11, 0
    %13 = vsyncpa [#allocation8], 0
    %14 = vsyncpa [#allocation6], 0
    %s15 = scalar_lea.sflag [#allocation6], 1
    %16 = vsyncpa %s15, 0
    loop: start=0, step=1, limit=10
    $region2: #{tpu_custom_call.1} parent=1 // loop_pre_header
      _
    $region3: #{tpu_custom_call.1} parent=1 // loop_header
      %s18 = sphi 0, %s22
      %p19 = scmp.ge.s32.totalorder %s18, 10
      %s25 = sphi 0, %s37
      %s26 = sphi 0, %s33
      %s27 = sphi 0, %s25
      %s28 = sphi 0, %s26
      %s29 = sphi 0, %s27
      %s30 = sphi 0, %s28
      %s40 = sphi 0, %s42
      %s43 = sphi 0, %s40
      %s44 = sphi 0, %s43
      %s60 = sphi 0, %s44
      %s64 = sphi 0, %s64
      %s66 = sphi 0, %s64
      %s67 = sphi 0, %s66
      %s81 = sphi 0, %s67
      %s85 = sphi 0, %s85
      %s87 = sphi 0, %s85
      %s88 = sphi 0, %s87
      %s102 = sphi 0, %s88
      %s106 = sphi 0, %s106
      %s108 = sphi 0, %s106
      %s109 = sphi 0, %s108
      %s123 = sphi 0, %s109
      %s127 = sphi 0, %s127
      %s129 = sphi 0, %s127
      %s130 = sphi 0, %s129
      %s144 = sphi 0, %s130
      %s152 = sphi 0, %s154
      %s155 = sphi 0, %s152
      %s156 = sphi 0, %s155
      %s172 = sphi 0, %s156
    $region4: #{tpu_custom_call.1} parent=1 // loop_header_branch
      %21 = sbr.rel (%p19) target = $region8
    $region5: #{tpu_custom_call.1} parent=1 // loop_body
      %s23 = ssub.s32 %s18, 1
      %s24 = ssub.s32 %s18, 2
      %s31 = sadd.s32 1, %s26
      %p32 = scmp.ge.s32.totalorder %s31, 4
      %s33 = scalar_select %p32, 0, %s31
      %s34 = sadd.s32 1, %s25
      %s35 = scalar_select %p32, %s34, %s25
      %p36 = scmp.ge.s32.totalorder %s35, 2
      %s37 = scalar_select %p36, 0, %s35
      %s38 = ssub.s32 %s25, %s37
      %p39 = scmp.eq.s32.totalorder %s38, 0
      %s41 = sadd.s32 %s40, 1
      %s42 = scalar_select %p39, %s40, %s41
      %p45 = pneg %p39
      %p46 = scmp.eq.s32.totalorder %s18, 7
      %p47 = por %p45, %p46
      %p48 = scmp.ne.s32.totalorder %s40, %s43
      %p49 = scmp.eq.s32.totalorder %s18, 0
      %p50 = por %p48, %p49
      %p51 = scmp.ne.s32.totalorder %s40, %s43
      %p52 = scmp.eq.s32.totalorder %s23, 7
      %p53 = por %p51, %p52
      %p54 = scmp.ne.s32.totalorder %s43, %s44
      %p55 = scmp.eq.s32.totalorder %s23, 0
      %p56 = por %p54, %p55
      %p57 = scmp.ne.s32.totalorder %s43, %s44
      %p58 = scmp.eq.s32.totalorder %s24, 7
      %p59 = por %p57, %p58
      %p61 = scmp.ne.s32.totalorder %s44, %s60
      %p62 = scmp.eq.s32.totalorder %s24, 0
      %p63 = por %p61, %p62
      %s65 = sadd.s32 %s64, 1
      %p68 = scmp.eq.s32.totalorder %s18, 7
      %p69 = scmp.ne.s32.totalorder %s64, %s66
      %p70 = scmp.eq.s32.totalorder %s18, 0
      %p71 = por %p69, %p70
      %p72 = scmp.ne.s32.totalorder %s64, %s66
      %p73 = scmp.eq.s32.totalorder %s23, 7
      %p74 = por %p72, %p73
      %p75 = scmp.ne.s32.totalorder %s66, %s67
      %p76 = scmp.eq.s32.totalorder %s23, 0
      %p77 = por %p75, %p76
      %p78 = scmp.ne.s32.totalorder %s66, %s67
      %p79 = scmp.eq.s32.totalorder %s24, 7
      %p80 = por %p78, %p79
      %p82 = scmp.ne.s32.totalorder %s67, %s81
      %p83 = scmp.eq.s32.totalorder %s24, 0
      %p84 = por %p82, %p83
      %s86 = sadd.s32 %s85, 1
      %p89 = scmp.eq.s32.totalorder %s18, 7
      %p90 = scmp.ne.s32.totalorder %s85, %s87
      %p91 = scmp.eq.s32.totalorder %s18, 0
      %p92 = por %p90, %p91
      %p93 = scmp.ne.s32.totalorder %s85, %s87
      %p94 = scmp.eq.s32.totalorder %s23, 7
      %p95 = por %p93, %p94
      %p96 = scmp.ne.s32.totalorder %s87, %s88
      %p97 = scmp.eq.s32.totalorder %s23, 0
      %p98 = por %p96, %p97
      %p99 = scmp.ne.s32.totalorder %s87, %s88
      %p100 = scmp.eq.s32.totalorder %s24, 7
      %p101 = por %p99, %p100
      %p103 = scmp.ne.s32.totalorder %s88, %s102
      %p104 = scmp.eq.s32.totalorder %s24, 0
      %p105 = por %p103, %p104
      %s107 = sadd.s32 %s106, 1
      %p110 = scmp.eq.s32.totalorder %s18, 7
      %p111 = scmp.ne.s32.totalorder %s106, %s108
      %p112 = scmp.eq.s32.totalorder %s18, 0
      %p113 = por %p111, %p112
      %p114 = scmp.ne.s32.totalorder %s106, %s108
      %p115 = scmp.eq.s32.totalorder %s23, 7
      %p116 = por %p114, %p115
      %p117 = scmp.ne.s32.totalorder %s108, %s109
      %p118 = scmp.eq.s32.totalorder %s23, 0
      %p119 = por %p117, %p118
      %p120 = scmp.ne.s32.totalorder %s108, %s109
      %p121 = scmp.eq.s32.totalorder %s24, 7
      %p122 = por %p120, %p121
      %p124 = scmp.ne.s32.totalorder %s109, %s123
      %p125 = scmp.eq.s32.totalorder %s24, 0
      %p126 = por %p124, %p125
      %s128 = sadd.s32 %s127, 1
      %p131 = scmp.eq.s32.totalorder %s18, 7
      %p132 = scmp.ne.s32.totalorder %s127, %s129
      %p133 = scmp.eq.s32.totalorder %s18, 0
      %p134 = por %p132, %p133
      %p135 = scmp.ne.s32.totalorder %s127, %s129
      %p136 = scmp.eq.s32.totalorder %s23, 7
      %p137 = por %p135, %p136
      %p138 = scmp.ne.s32.totalorder %s129, %s130
      %p139 = scmp.eq.s32.totalorder %s23, 0
      %p140 = por %p138, %p139
      %p141 = scmp.ne.s32.totalorder %s129, %s130
      %p142 = scmp.eq.s32.totalorder %s24, 7
      %p143 = por %p141, %p142
      %p145 = scmp.ne.s32.totalorder %s130, %s144
      %p146 = scmp.eq.s32.totalorder %s24, 0
      %p147 = por %p145, %p146
      %s148 = ssub.s32 %s25, %s37
      %s149 = ssub.s32 %s26, %s33
      %s150 = sor.u32 %s148, %s149
      %p151 = scmp.eq.s32.totalorder %s150, 0
      %s153 = sadd.s32 %s152, 1
      %s154 = scalar_select %p151, %s152, %s153
      %p157 = pneg %p151
      %p158 = scmp.eq.s32.totalorder %s18, 7
      %p159 = por %p157, %p158
      %p160 = scmp.ne.s32.totalorder %s152, %s155
      %p161 = scmp.eq.s32.totalorder %s18, 0
      %p162 = por %p160, %p161
      %p163 = scmp.ne.s32.totalorder %s152, %s155
      %p164 = scmp.eq.s32.totalorder %s23, 7
      %p165 = por %p163, %p164
      %p166 = scmp.ne.s32.totalorder %s155, %s156
      %p167 = scmp.eq.s32.totalorder %s23, 0
      %p168 = por %p166, %p167
      %p169 = scmp.ne.s32.totalorder %s155, %s156
      %p170 = scmp.eq.s32.totalorder %s24, 7
      %p171 = por %p169, %p170
      %p173 = scmp.ne.s32.totalorder %s156, %s172
      %p174 = scmp.eq.s32.totalorder %s24, 0
      %p175 = por %p173, %p174
      %p176 = scmp.le.s32.totalorder 1, %s18
      %p177 = scmp.lt.s32.totalorder %s18, 9
      %p178 = pnand %p176, %p177
      %p179 = pneg %p178
      // Predicated region
      $region9: #{tpu_custom_call.1} parent=5 // pred_check
        _
      $region10: #{tpu_custom_call.1} parent=5 // pred_check_branch
        %181 = sbr.rel (%p178) target = $region12
      $region11: #{tpu_custom_call.1} parent=5 // pred_region
        %s182 = ssub.s32 %s18, 1
        // Predicated region
        $region13: #{tpu_custom_call.1} parent=11 // pred_check
          %p183 = pneg %p77
        $region14: #{tpu_custom_call.1} parent=11 // pred_check_branch
          %185 = sbr.rel (%p183) target = $region16
        $region15: #{tpu_custom_call.1} parent=11 // pred_region
          %187 = vsyncadd [#allocation8], 0
          %s188 = sshll.u32 %s1, 4
          %s189 = int_to_ptr.hbm [resolvable:$true] %s188
          %s190 = sshll.u32 [#allocation7], 4
          %s191 = int_to_ptr.vmem [resolvable:$true] %s190
          %196 = dma.hbm_to_vmem [thread:$0]  %s189, 6144, %s191, [#allocation8], 128, 128, 8
        $region16: #{tpu_custom_call.1} parent=11 // pred_fallthru
          _
        // Predicated region
        $region17: #{tpu_custom_call.1} parent=11 // pred_check
          %p197 = pneg %p98
        $region18: #{tpu_custom_call.1} parent=11 // pred_check_branch
          %199 = sbr.rel (%p197) target = $region20
        $region19: #{tpu_custom_call.1} parent=11 // pred_region
          _
        $region20: #{tpu_custom_call.1} parent=11 // pred_fallthru
          _
        // Predicated region
        $region21: #{tpu_custom_call.1} parent=11 // pred_check
          %p200 = pneg %p119
        $region22: #{tpu_custom_call.1} parent=11 // pred_check_branch
          %202 = sbr.rel (%p200) target = $region24
        $region23: #{tpu_custom_call.1} parent=11 // pred_region
          %204 = vsyncadd [#allocation8], 0
          %s205 = sshll.u32 %s3, 4
          %s206 = int_to_ptr.hbm [resolvable:$true] %s205
          %s207 = sshll.u32 [#allocation9], 4
          %s208 = int_to_ptr.vmem [resolvable:$true] %s207
          %213 = dma.hbm_to_vmem [thread:$0]  %s206, 6144, %s208, [#allocation8], 128, 128, 8
        $region24: #{tpu_custom_call.1} parent=11 // pred_fallthru
          _
        // Predicated region
        $region25: #{tpu_custom_call.1} parent=11 // pred_check
          %p214 = pneg %p140
        $region26: #{tpu_custom_call.1} parent=11 // pred_check_branch
          %216 = sbr.rel (%p214) target = $region28
        $region27: #{tpu_custom_call.1} parent=11 // pred_region
          _
        $region28: #{tpu_custom_call.1} parent=11 // pred_fallthru
          _
      $region12: #{tpu_custom_call.1} parent=5 // pred_fallthru
        _
      %p217 = scmp.lt.s32.totalorder %s18, 8
      // Predicated region
      $region29: #{tpu_custom_call.1} parent=5 // pred_check
        %p218 = pneg %p217
      $region30: #{tpu_custom_call.1} parent=5 // pred_check_branch
        %220 = sbr.rel (%p218) target = $region32
      $region31: #{tpu_custom_call.1} parent=5 // pred_region
        // Predicated region
        $region33: #{tpu_custom_call.1} parent=31 // pred_check
          %p221 = pneg %p50
        $region34: #{tpu_custom_call.1} parent=31 // pred_check_branch
          %223 = sbr.rel (%p221) target = $region36
        $region35: #{tpu_custom_call.1} parent=31 // pred_region
          %s224 = sand.u32 %s40, 1
          %s225 = scalar_lea.sflag [#allocation5], %s224
          %s226 = sand.u32 %s40, 1
          %s227 = smul.addr %s226, 512
          %s228 = scalar_lea.vmem [#allocation4], %s227
          %230 = vsyncadd %s225, 0
          %s231 = smul.addr %s25, 64
          %s232 = smul.addr %s231, 8
          %s233 = scalar_lea.hbm %s0, %s232
          %s234 = sshll.u32 %s233, 4
          %s235 = int_to_ptr.hbm [resolvable:$true] %s234
          %s236 = sshll.u32 %s228, 4
          %s237 = int_to_ptr.vmem [resolvable:$true] %s236
          %242 = dma.hbm_to_vmem [thread:$0]  %s235, 8192, %s237, %s225, 128, 128, 8
        $region36: #{tpu_custom_call.1} parent=31 // pred_fallthru
          _
      $region32: #{tpu_custom_call.1} parent=5 // pred_fallthru
        _
      %p243 = scmp.le.s32.totalorder 1, %s18
      %p244 = scmp.lt.s32.totalorder %s18, 9
      %p245 = pnand %p243, %p244
      %p246 = pneg %p245
      // Predicated region
      $region37: #{tpu_custom_call.1} parent=5 // pred_check
        _
      $region38: #{tpu_custom_call.1} parent=5 // pred_check_branch
        %248 = sbr.rel (%p245) target = $region40
      $region39: #{tpu_custom_call.1} parent=5 // pred_region
        %s249 = ssub.s32 %s18, 1
        %s250 = sand.u32 %s43, 1
        %s251 = scalar_lea.sflag [#allocation5], %s250
        %s252 = sand.u32 %s43, 1
        %s253 = smul.addr %s252, 512
        %s254 = scalar_lea.vmem [#allocation4], %s253
        // Predicated region
        $region41: #{tpu_custom_call.1} parent=39 // pred_check
          %p255 = pneg %p56
        $region42: #{tpu_custom_call.1} parent=39 // pred_check_branch
          %257 = sbr.rel (%p255) target = $region44
        $region43: #{tpu_custom_call.1} parent=39 // pred_region
          %259 = dma.done %s251, 8192
        $region44: #{tpu_custom_call.1} parent=39 // pred_fallthru
          _
        // Predicated region
        $region45: #{tpu_custom_call.1} parent=39 // pred_check
          %p260 = pneg %p77
        $region46: #{tpu_custom_call.1} parent=39 // pred_check_branch
          %262 = sbr.rel (%p260) target = $region48
        $region47: #{tpu_custom_call.1} parent=39 // pred_region
          %264 = dma.done [#allocation8], 6144
        $region48: #{tpu_custom_call.1} parent=39 // pred_fallthru
          _
        // Predicated region
        $region49: #{tpu_custom_call.1} parent=39 // pred_check
          %p265 = pneg %p119
        $region50: #{tpu_custom_call.1} parent=39 // pred_check_branch
          %267 = sbr.rel (%p265) target = $region52
        $region51: #{tpu_custom_call.1} parent=39 // pred_region
          %269 = dma.done [#allocation8], 6144
        $region52: #{tpu_custom_call.1} parent=39 // pred_fallthru
          _
        %s270 = sand.u32 %s43, 1
        %s271 = scalar_lea.sflag [#allocation5], %s270
        %s272 = sand.u32 %s43, 1
        %s273 = smul.addr %s272, 512
        %s274 = scalar_lea.vmem [#allocation4], %s273
        %p275 = pneg %p56
        %p276 = pneg %p53
        %p277 = pneg %p77
        %p278 = pneg %p74
        %p279 = pneg %p98
        %p280 = pneg %p95
        %p281 = pneg %p119
        %p282 = pneg %p116
        %p283 = pneg %p140
        %p284 = pneg %p137
        %p285 = pneg %p168
        %p286 = pneg %p165
        %s287 = sand.u32 %s155, 1
        %s288 = scalar_lea.sflag [#allocation6], %s287
        %s289 = sand.u32 %s155, 1
        %s290 = smul.addr %s289, 128
        %s291 = scalar_lea.vmem [#allocation10], %s290
        %s292 = smul.u32 16, %s28
        %p293 = scmp.eq.s32.totalorder %s28, 0
        // Predicated region
        $region53: #{tpu_custom_call.1} parent=39 // pred_check
          %p294 = pneg %p293
        $region54: #{tpu_custom_call.1} parent=39 // pred_check_branch
          %296 = sbr.rel (%p294) target = $region56
        $region55: #{tpu_custom_call.1} parent=39 // pred_region
          %297 = vst [vmem:[#allocation2] sm:$0xff] 0.0
          %298 = vst [vmem:[#allocation2 + $0x8] sm:$0xff] 0.0
          %v299 = vld [vmem:[%s254] sm:$0xff]
          %v300 = vld [vmem:[%s254 + $0x8] sm:$0xff]
          %v301 = vld [vmem:[%s254 + $0x10] sm:$0xff]
          %v302 = vld [vmem:[%s254 + $0x18] sm:$0xff]
          %v303 = vld [vmem:[%s254 + $0x20] sm:$0xff]
          %v304 = vld [vmem:[%s254 + $0x28] sm:$0xff]
          %v305 = vld [vmem:[%s254 + $0x30] sm:$0xff]
          %v306 = vld [vmem:[%s254 + $0x38] sm:$0xff]
          %v307 = vld [vmem:[%s254 + $0x40] sm:$0xff]
          %v308 = vld [vmem:[%s254 + $0x48] sm:$0xff]
          %v309 = vld [vmem:[%s254 + $0x50] sm:$0xff]
          %v310 = vld [vmem:[%s254 + $0x58] sm:$0xff]
          %v311 = vld [vmem:[%s254 + $0x60] sm:$0xff]
          %v312 = vld [vmem:[%s254 + $0x68] sm:$0xff]
          %v313 = vld [vmem:[%s254 + $0x70] sm:$0xff]
          %v314 = vld [vmem:[%s254 + $0x78] sm:$0xff]
          %v315 = vld [vmem:[%s254 + $0x80] sm:$0xff]
          %v316 = vld [vmem:[%s254 + $0x88] sm:$0xff]
          %v317 = vld [vmem:[%s254 + $0x90] sm:$0xff]
          %v318 = vld [vmem:[%s254 + $0x98] sm:$0xff]
          %v319 = vld [vmem:[%s254 + $0xa0] sm:$0xff]
          %v320 = vld [vmem:[%s254 + $0xa8] sm:$0xff]
          %v321 = vld [vmem:[%s254 + $0xb0] sm:$0xff]
          %v322 = vld [vmem:[%s254 + $0xb8] sm:$0xff]
          %v323 = vld [vmem:[%s254 + $0xc0] sm:$0xff]
          %v324 = vld [vmem:[%s254 + $0xc8] sm:$0xff]
          %v325 = vld [vmem:[%s254 + $0xd0] sm:$0xff]
          %v326 = vld [vmem:[%s254 + $0xd8] sm:$0xff]
          %v327 = vld [vmem:[%s254 + $0xe0] sm:$0xff]
          %v328 = vld [vmem:[%s254 + $0xe8] sm:$0xff]
          %v329 = vld [vmem:[%s254 + $0xf0] sm:$0xff]
          %v330 = vld [vmem:[%s254 + $0xf8] sm:$0xff]
          %v331 = vld [vmem:[%s254 + $0x100] sm:$0xff]
          %v332 = vld [vmem:[%s254 + $0x108] sm:$0xff]
          %v333 = vld [vmem:[%s254 + $0x110] sm:$0xff]
          %v334 = vld [vmem:[%s254 + $0x118] sm:$0xff]
          %v335 = vld [vmem:[%s254 + $0x120] sm:$0xff]
          %v336 = vld [vmem:[%s254 + $0x128] sm:$0xff]
          %v337 = vld [vmem:[%s254 + $0x130] sm:$0xff]
          %v338 = vld [vmem:[%s254 + $0x138] sm:$0xff]
          %v339 = vld [vmem:[%s254 + $0x140] sm:$0xff]
          %v340 = vld [vmem:[%s254 + $0x148] sm:$0xff]
          %v341 = vld [vmem:[%s254 + $0x150] sm:$0xff]
          %v342 = vld [vmem:[%s254 + $0x158] sm:$0xff]
          %v343 = vld [vmem:[%s254 + $0x160] sm:$0xff]
          %v344 = vld [vmem:[%s254 + $0x168] sm:$0xff]
          %v345 = vld [vmem:[%s254 + $0x170] sm:$0xff]
          %v346 = vld [vmem:[%s254 + $0x178] sm:$0xff]
          %v347 = vld [vmem:[%s254 + $0x180] sm:$0xff]
          %v348 = vld [vmem:[%s254 + $0x188] sm:$0xff]
          %v349 = vld [vmem:[%s254 + $0x190] sm:$0xff]
          %v350 = vld [vmem:[%s254 + $0x198] sm:$0xff]
          %v351 = vld [vmem:[%s254 + $0x1a0] sm:$0xff]
          %v352 = vld [vmem:[%s254 + $0x1a8] sm:$0xff]
          %v353 = vld [vmem:[%s254 + $0x1b0] sm:$0xff]
          %v354 = vld [vmem:[%s254 + $0x1b8] sm:$0xff]
          %v355 = vld [vmem:[%s254 + $0x1c0] sm:$0xff]
          %v356 = vld [vmem:[%s254 + $0x1c8] sm:$0xff]
          %v357 = vld [vmem:[%s254 + $0x1d0] sm:$0xff]
          %v358 = vld [vmem:[%s254 + $0x1d8] sm:$0xff]
          %v359 = vld [vmem:[%s254 + $0x1e0] sm:$0xff]
          %v360 = vld [vmem:[%s254 + $0x1e8] sm:$0xff]
          %v361 = vld [vmem:[%s254 + $0x1f0] sm:$0xff]
          %v362 = vld [vmem:[%s254 + $0x1f8] sm:$0xff]
          %s363 = scalar_lea.vmem [#allocation2], 16
          %364 = vst [vmem:[%s363] sm:$0xff] %v299
          %365 = vst [vmem:[%s363 + $0x8] sm:$0xff] %v300
          %366 = vst [vmem:[%s363 + $0x10] sm:$0xff] %v301
          %367 = vst [vmem:[%s363 + $0x18] sm:$0xff] %v302
          %368 = vst [vmem:[%s363 + $0x20] sm:$0xff] %v303
          %369 = vst [vmem:[%s363 + $0x28] sm:$0xff] %v304
          %370 = vst [vmem:[%s363 + $0x30] sm:$0xff] %v305
          %371 = vst [vmem:[%s363 + $0x38] sm:$0xff] %v306
          %372 = vst [vmem:[%s363 + $0x40] sm:$0xff] %v307
          %373 = vst [vmem:[%s363 + $0x48] sm:$0xff] %v308
          %374 = vst [vmem:[%s363 + $0x50] sm:$0xff] %v309
          %375 = vst [vmem:[%s363 + $0x58] sm:$0xff] %v310
          %376 = vst [vmem:[%s363 + $0x60] sm:$0xff] %v311
          %377 = vst [vmem:[%s363 + $0x68] sm:$0xff] %v312
          %378 = vst [vmem:[%s363 + $0x70] sm:$0xff] %v313
          %379 = vst [vmem:[%s363 + $0x78] sm:$0xff] %v314
          %380 = vst [vmem:[%s363 + $0x80] sm:$0xff] %v315
          %381 = vst [vmem:[%s363 + $0x88] sm:$0xff] %v316
          %382 = vst [vmem:[%s363 + $0x90] sm:$0xff] %v317
          %383 = vst [vmem:[%s363 + $0x98] sm:$0xff] %v318
          %384 = vst [vmem:[%s363 + $0xa0] sm:$0xff] %v319
          %385 = vst [vmem:[%s363 + $0xa8] sm:$0xff] %v320
          %386 = vst [vmem:[%s363 + $0xb0] sm:$0xff] %v321
          %387 = vst [vmem:[%s363 + $0xb8] sm:$0xff] %v322
          %388 = vst [vmem:[%s363 + $0xc0] sm:$0xff] %v323
          %389 = vst [vmem:[%s363 + $0xc8] sm:$0xff] %v324
          %390 = vst [vmem:[%s363 + $0xd0] sm:$0xff] %v325
          %391 = vst [vmem:[%s363 + $0xd8] sm:$0xff] %v326
          %392 = vst [vmem:[%s363 + $0xe0] sm:$0xff] %v327
          %393 = vst [vmem:[%s363 + $0xe8] sm:$0xff] %v328
          %394 = vst [vmem:[%s363 + $0xf0] sm:$0xff] %v329
          %395 = vst [vmem:[%s363 + $0xf8] sm:$0xff] %v330
          %396 = vst [vmem:[%s363 + $0x100] sm:$0xff] %v331
          %397 = vst [vmem:[%s363 + $0x108] sm:$0xff] %v332
          %398 = vst [vmem:[%s363 + $0x110] sm:$0xff] %v333
          %399 = vst [vmem:[%s363 + $0x118] sm:$0xff] %v334
          %400 = vst [vmem:[%s363 + $0x120] sm:$0xff] %v335
          %401 = vst [vmem:[%s363 + $0x128] sm:$0xff] %v336
          %402 = vst [vmem:[%s363 + $0x130] sm:$0xff] %v337
          %403 = vst [vmem:[%s363 + $0x138] sm:$0xff] %v338
          %404 = vst [vmem:[%s363 + $0x140] sm:$0xff] %v339
          %405 = vst [vmem:[%s363 + $0x148] sm:$0xff] %v340
          %406 = vst [vmem:[%s363 + $0x150] sm:$0xff] %v341
          %407 = vst [vmem:[%s363 + $0x158] sm:$0xff] %v342
          %408 = vst [vmem:[%s363 + $0x160] sm:$0xff] %v343
          %409 = vst [vmem:[%s363 + $0x168] sm:$0xff] %v344
          %410 = vst [vmem:[%s363 + $0x170] sm:$0xff] %v345
          %411 = vst [vmem:[%s363 + $0x178] sm:$0xff] %v346
          %412 = vst [vmem:[%s363 + $0x180] sm:$0xff] %v347
          %413 = vst [vmem:[%s363 + $0x188] sm:$0xff] %v348
          %414 = vst [vmem:[%s363 + $0x190] sm:$0xff] %v349
          %415 = vst [vmem:[%s363 + $0x198] sm:$0xff] %v350
          %416 = vst [vmem:[%s363 + $0x1a0] sm:$0xff] %v351
          %417 = vst [vmem:[%s363 + $0x1a8] sm:$0xff] %v352
          %418 = vst [vmem:[%s363 + $0x1b0] sm:$0xff] %v353
          %419 = vst [vmem:[%s363 + $0x1b8] sm:$0xff] %v354
          %420 = vst [vmem:[%s363 + $0x1c0] sm:$0xff] %v355
          %421 = vst [vmem:[%s363 + $0x1c8] sm:$0xff] %v356
          %422 = vst [vmem:[%s363 + $0x1d0] sm:$0xff] %v357
          %423 = vst [vmem:[%s363 + $0x1d8] sm:$0xff] %v358
          %424 = vst [vmem:[%s363 + $0x1e0] sm:$0xff] %v359
          %425 = vst [vmem:[%s363 + $0x1e8] sm:$0xff] %v360
          %426 = vst [vmem:[%s363 + $0x1f0] sm:$0xff] %v361
          %427 = vst [vmem:[%s363 + $0x1f8] sm:$0xff] %v362
          %s428 = scalar_lea.vmem [#allocation2], 528
          %429 = vst [vmem:[%s428] sm:$0xff] 0.0
          %430 = vst [vmem:[%s428 + $0x8] sm:$0xff] 0.0
        $region56: #{tpu_custom_call.1} parent=39 // pred_fallthru
          _
        %s431 = smul.u32 %s28, 16
        %s432 = smul.u32 %s431, 8
        %s433 = scalar_lea.vmem [#allocation2], %s432
        %v434 = vld [vmem:[%s433] sm:$0xff]
        %v435 = vld [vmem:[%s433 + $0x8] sm:$0xff]
        %v436 = vld [vmem:[%s433 + $0x10] sm:$0xff]
        %v437 = vld [vmem:[%s433 + $0x18] sm:$0xff]
        %v438 = vld [vmem:[%s433 + $0x20] sm:$0xff]
        %v439 = vld [vmem:[%s433 + $0x28] sm:$0xff]
        %v440 = vld [vmem:[%s433 + $0x30] sm:$0xff]
        %v441 = vld [vmem:[%s433 + $0x38] sm:$0xff]
        %v442 = vld [vmem:[%s433 + $0x40] sm:$0xff]
        %v443 = vld [vmem:[%s433 + $0x48] sm:$0xff]
        %v444 = vld [vmem:[%s433 + $0x50] sm:$0xff]
        %v445 = vld [vmem:[%s433 + $0x58] sm:$0xff]
        %v446 = vld [vmem:[%s433 + $0x60] sm:$0xff]
        %v447 = vld [vmem:[%s433 + $0x68] sm:$0xff]
        %v448 = vld [vmem:[%s433 + $0x70] sm:$0xff]
        %v449 = vld [vmem:[%s433 + $0x78] sm:$0xff]
        %v450 = vld [vmem:[%s433 + $0x80] sm:$0xff]
        %v451 = vld [vmem:[%s433 + $0x88] sm:$0xff]
        %s452 = sadd.s32 %s431, 1
        %s453 = smul.u32 %s452, 8
        %s454 = scalar_lea.vmem [#allocation2], %s453
        %v455 = vld [vmem:[%s454] sm:$0xff]
        %v456 = vld [vmem:[%s454 + $0x8] sm:$0xff]
        %v457 = vld [vmem:[%s454 + $0x10] sm:$0xff]
        %v458 = vld [vmem:[%s454 + $0x18] sm:$0xff]
        %v459 = vld [vmem:[%s454 + $0x20] sm:$0xff]
        %v460 = vld [vmem:[%s454 + $0x28] sm:$0xff]
        %v461 = vld [vmem:[%s454 + $0x30] sm:$0xff]
        %v462 = vld [vmem:[%s454 + $0x38] sm:$0xff]
        %v463 = vld [vmem:[%s454 + $0x40] sm:$0xff]
        %v464 = vld [vmem:[%s454 + $0x48] sm:$0xff]
        %v465 = vld [vmem:[%s454 + $0x50] sm:$0xff]
        %v466 = vld [vmem:[%s454 + $0x58] sm:$0xff]
        %v467 = vld [vmem:[%s454 + $0x60] sm:$0xff]
        %v468 = vld [vmem:[%s454 + $0x68] sm:$0xff]
        %v469 = vld [vmem:[%s454 + $0x70] sm:$0xff]
        %v470 = vld [vmem:[%s454 + $0x78] sm:$0xff]
        %v471 = vld [vmem:[%s454 + $0x80] sm:$0xff]
        %v472 = vld [vmem:[%s454 + $0x88] sm:$0xff]
        %s473 = sadd.s32 %s431, 2
        %s474 = smul.u32 %s473, 8
        %s475 = scalar_lea.vmem [#allocation2], %s474
        %v476 = vld [vmem:[%s475] sm:$0xff]
        %v477 = vld [vmem:[%s475 + $0x8] sm:$0xff]
        %v478 = vld [vmem:[%s475 + $0x10] sm:$0xff]
        %v479 = vld [vmem:[%s475 + $0x18] sm:$0xff]
        %v480 = vld [vmem:[%s475 + $0x20] sm:$0xff]
        %v481 = vld [vmem:[%s475 + $0x28] sm:$0xff]
        %v482 = vld [vmem:[%s475 + $0x30] sm:$0xff]
        %v483 = vld [vmem:[%s475 + $0x38] sm:$0xff]
        %v484 = vld [vmem:[%s475 + $0x40] sm:$0xff]
        %v485 = vld [vmem:[%s475 + $0x48] sm:$0xff]
        %v486 = vld [vmem:[%s475 + $0x50] sm:$0xff]
        %v487 = vld [vmem:[%s475 + $0x58] sm:$0xff]
        %v488 = vld [vmem:[%s475 + $0x60] sm:$0xff]
        %v489 = vld [vmem:[%s475 + $0x68] sm:$0xff]
        %v490 = vld [vmem:[%s475 + $0x70] sm:$0xff]
        %v491 = vld [vmem:[%s475 + $0x78] sm:$0xff]
        %v492 = vld [vmem:[%s475 + $0x80] sm:$0xff]
        %v493 = vld [vmem:[%s475 + $0x88] sm:$0xff]
        %v494 = vld [vmem:[#allocation7] sm:$0xff]
        %v495 = vld [vmem:[#allocation7 + $0x8] sm:$0xff]
        %v496 = vld [vmem:[#allocation7 + $0x10] sm:$0xff]
        %v497 = vld [vmem:[#allocation7 + $0x18] sm:$0xff]
        %v498 = vld [vmem:[#allocation7 + $0x20] sm:$0xff]
        %v499 = vld [vmem:[#allocation7 + $0x28] sm:$0xff]
        %v500 = vld [vmem:[#allocation7 + $0x30] sm:$0xff]
        %v501 = vld [vmem:[#allocation7 + $0x38] sm:$0xff]
        %v502 = vld [vmem:[#allocation7 + $0x40] sm:$0xff]
        %v503 = vld [vmem:[#allocation7 + $0x48] sm:$0xff]
        %v504 = vld [vmem:[#allocation7 + $0x50] sm:$0xff]
        %v505 = vld [vmem:[#allocation7 + $0x58] sm:$0xff]
        %v506 = vld [vmem:[#allocation7 + $0x60] sm:$0xff]
        %v507 = vld [vmem:[#allocation7 + $0x68] sm:$0xff]
        %v508 = vld [vmem:[#allocation7 + $0x70] sm:$0xff]
        %v509 = vld [vmem:[#allocation7 + $0x78] sm:$0xff]
        %v510 = vld [vmem:[#allocation7 + $0x80] sm:$0xff]
        %v511 = vld [vmem:[#allocation7 + $0x88] sm:$0xff]
        %v512 = vld [vmem:[#allocation7 + $0x90] sm:$0xff]
        %v513 = vld [vmem:[#allocation7 + $0x98] sm:$0xff]
        %v514 = vld [vmem:[#allocation7 + $0xa0] sm:$0xff]
        %v515 = vld [vmem:[#allocation7 + $0xa8] sm:$0xff]
        %v516 = vld [vmem:[#allocation7 + $0xb0] sm:$0xff]
        %v517 = vld [vmem:[#allocation7 + $0xb8] sm:$0xff]
        %v518 = vld [vmem:[#allocation7 + $0xc0] sm:$0xff]
        %v519 = vld [vmem:[#allocation7 + $0xc8] sm:$0xff]
        %v520 = vld [vmem:[#allocation7 + $0xd0] sm:$0xff]
        %v521 = vld [vmem:[#allocation7 + $0xd8] sm:$0xff]
        %v522 = vld [vmem:[#allocation7 + $0xe0] sm:$0xff]
        %v523 = vld [vmem:[#allocation7 + $0xe8] sm:$0xff]
        %v524 = vld [vmem:[#allocation7 + $0xf0] sm:$0xff]
        %v525 = vld [vmem:[#allocation7 + $0xf8] sm:$0xff]
        %v526 = vld [vmem:[#allocation7 + $0x100] sm:$0xff]
        %v527 = vld [vmem:[#allocation7 + $0x108] sm:$0xff]
        %v528 = vld [vmem:[#allocation7 + $0x110] sm:$0xff]
        %v529 = vld [vmem:[#allocation7 + $0x118] sm:$0xff]
        %v530 = vld [vmem:[#allocation7 + $0x120] sm:$0xff]
        %v531 = vld [vmem:[#allocation7 + $0x128] sm:$0xff]
        %v532 = vld [vmem:[#allocation7 + $0x130] sm:$0xff]
        %v533 = vld [vmem:[#allocation7 + $0x138] sm:$0xff]
        %v534 = vld [vmem:[#allocation7 + $0x140] sm:$0xff]
        %v535 = vld [vmem:[#allocation7 + $0x148] sm:$0xff]
        %v536 = vld [vmem:[#allocation7 + $0x150] sm:$0xff]
        %v537 = vld [vmem:[#allocation7 + $0x158] sm:$0xff]
        %v538 = vld [vmem:[#allocation7 + $0x160] sm:$0xff]
        %v539 = vld [vmem:[#allocation7 + $0x168] sm:$0xff]
        %v540 = vld [vmem:[#allocation7 + $0x170] sm:$0xff]
        %v541 = vld [vmem:[#allocation7 + $0x178] sm:$0xff]
        %v542 = vld [vmem:[%s2] sm:$0x1]
        %v544 = vperm.slane %v542, 0
        %546 = vmatpush.msra.mxu0 %v509
        %547 = vmatpush.msra.mxu0 %v508
        %548 = vmatpush.msra.mxu0 %v507
        %549 = vmatpush.msra.mxu0 %v506
        %550 = vmatpush.msra.mxu0 %v505
        %551 = vmatpush.msra.mxu0 %v504
        %552 = vmatpush.msra.mxu0 %v503
        %553 = vmatpush.msra.mxu0 %v502
        %554 = vmatpush.msra.mxu0 %v501
        %555 = vmatpush.msra.mxu0 %v500
        %556 = vmatpush.msra.mxu0 %v499
        %557 = vmatpush.msra.mxu0 %v498
        %558 = vmatpush.msra.mxu0 %v497
        %559 = vmatpush.msra.mxu0 %v496
        %560 = vmatpush.msra.mxu0 %v495
        %561 = vmatpush.msra.mxu0 %v494
        %562 = vmatmul.f32.gmra.mxu0 %v434
        %v563 = vpop.f32.mrf.mxu0
        %v564 = vadd.f32 %v544, %v563
        %565 = vmatmul.f32.gmra.mxu0 %v435
        %v566 = vpop.f32.mrf.mxu0
        %v567 = vadd.f32 %v544, %v566
        %568 = vmatmul.f32.gmra.mxu0 %v436
        %v569 = vpop.f32.mrf.mxu0
        %v570 = vadd.f32 %v544, %v569
        %571 = vmatmul.f32.gmra.mxu0 %v437
        %v572 = vpop.f32.mrf.mxu0
        %v573 = vadd.f32 %v544, %v572
        %574 = vmatmul.f32.gmra.mxu0 %v438
        %v575 = vpop.f32.mrf.mxu0
        %v576 = vadd.f32 %v544, %v575
        %577 = vmatmul.f32.gmra.mxu0 %v439
        %v578 = vpop.f32.mrf.mxu0
        %v579 = vadd.f32 %v544, %v578
        %580 = vmatmul.f32.gmra.mxu0 %v440
        %v581 = vpop.f32.mrf.mxu0
        %v582 = vadd.f32 %v544, %v581
        %583 = vmatmul.f32.gmra.mxu0 %v441
        %v584 = vpop.f32.mrf.mxu0
        %v585 = vadd.f32 %v544, %v584
        %586 = vmatmul.f32.gmra.mxu0 %v442
        %v587 = vpop.f32.mrf.mxu0
        %v588 = vadd.f32 %v544, %v587
        %589 = vmatmul.f32.gmra.mxu0 %v443
        %v590 = vpop.f32.mrf.mxu0
        %v591 = vadd.f32 %v544, %v590
        %592 = vmatmul.f32.gmra.mxu0 %v444
        %v593 = vpop.f32.mrf.mxu0
        %v594 = vadd.f32 %v544, %v593
        %595 = vmatmul.f32.gmra.mxu0 %v445
        %v596 = vpop.f32.mrf.mxu0
        %v597 = vadd.f32 %v544, %v596
        %598 = vmatmul.f32.gmra.mxu0 %v446
        %v599 = vpop.f32.mrf.mxu0
        %v600 = vadd.f32 %v544, %v599
        %601 = vmatmul.f32.gmra.mxu0 %v447
        %v602 = vpop.f32.mrf.mxu0
        %v603 = vadd.f32 %v544, %v602
        %604 = vmatmul.f32.gmra.mxu0 %v448
        %v605 = vpop.f32.mrf.mxu0
        %v606 = vadd.f32 %v544, %v605
        %607 = vmatmul.f32.gmra.mxu0 %v449
        %v608 = vpop.f32.mrf.mxu0
        %v609 = vadd.f32 %v544, %v608
        %610 = vmatmul.f32.gmra.mxu0 %v450
        %v611 = vpop.f32.mrf.mxu0
        %v612 = vadd.f32 %v544, %v611
        %613 = vmatmul.f32.gmra.mxu0 %v451
        %v614 = vpop.f32.mrf.mxu0
        %v615 = vadd.f32 %v544, %v614
        %616 = vdwg.mxu0
        %617 = vmatpush.msra.mxu0 %v525
        %618 = vmatpush.msra.mxu0 %v524
        %619 = vmatpush.msra.mxu0 %v523
        %620 = vmatpush.msra.mxu0 %v522
        %621 = vmatpush.msra.mxu0 %v521
        %622 = vmatpush.msra.mxu0 %v520
        %623 = vmatpush.msra.mxu0 %v519
        %624 = vmatpush.msra.mxu0 %v518
        %625 = vmatpush.msra.mxu0 %v517
        %626 = vmatpush.msra.mxu0 %v516
        %627 = vmatpush.msra.mxu0 %v515
        %628 = vmatpush.msra.mxu0 %v514
        %629 = vmatpush.msra.mxu0 %v513
        %630 = vmatpush.msra.mxu0 %v512
        %631 = vmatpush.msra.mxu0 %v511
        %632 = vmatpush.msra.mxu0 %v510
        %633 = vmatmul.f32.gmra.mxu0 %v455
        %v634 = vpop.f32.mrf.mxu0
        %v635 = vadd.f32 %v564, %v634
        %636 = vmatmul.f32.gmra.mxu0 %v456
        %v637 = vpop.f32.mrf.mxu0
        %v638 = vadd.f32 %v567, %v637
        %639 = vmatmul.f32.gmra.mxu0 %v457
        %v640 = vpop.f32.mrf.mxu0
        %v641 = vadd.f32 %v570, %v640
        %642 = vmatmul.f32.gmra.mxu0 %v458
        %v643 = vpop.f32.mrf.mxu0
        %v644 = vadd.f32 %v573, %v643
        %645 = vmatmul.f32.gmra.mxu0 %v459
        %v646 = vpop.f32.mrf.mxu0
        %v647 = vadd.f32 %v576, %v646
        %648 = vmatmul.f32.gmra.mxu0 %v460
        %v649 = vpop.f32.mrf.mxu0
        %v650 = vadd.f32 %v579, %v649
        %651 = vmatmul.f32.gmra.mxu0 %v461
        %v652 = vpop.f32.mrf.mxu0
        %v653 = vadd.f32 %v582, %v652
        %654 = vmatmul.f32.gmra.mxu0 %v462
        %v655 = vpop.f32.mrf.mxu0
        %v656 = vadd.f32 %v585, %v655
        %657 = vmatmul.f32.gmra.mxu0 %v463
        %v658 = vpop.f32.mrf.mxu0
        %v659 = vadd.f32 %v588, %v658
        %660 = vmatmul.f32.gmra.mxu0 %v464
        %v661 = vpop.f32.mrf.mxu0
        %v662 = vadd.f32 %v591, %v661
        %663 = vmatmul.f32.gmra.mxu0 %v465
        %v664 = vpop.f32.mrf.mxu0
        %v665 = vadd.f32 %v594, %v664
        %666 = vmatmul.f32.gmra.mxu0 %v466
        %v667 = vpop.f32.mrf.mxu0
        %v668 = vadd.f32 %v597, %v667
        %669 = vmatmul.f32.gmra.mxu0 %v467
        %v670 = vpop.f32.mrf.mxu0
        %v671 = vadd.f32 %v600, %v670
        %672 = vmatmul.f32.gmra.mxu0 %v468
        %v673 = vpop.f32.mrf.mxu0
        %v674 = vadd.f32 %v603, %v673
        %675 = vmatmul.f32.gmra.mxu0 %v469
        %v676 = vpop.f32.mrf.mxu0
        %v677 = vadd.f32 %v606, %v676
        %678 = vmatmul.f32.gmra.mxu0 %v470
        %v679 = vpop.f32.mrf.mxu0
        %v680 = vadd.f32 %v609, %v679
        %681 = vmatmul.f32.gmra.mxu0 %v471
        %v682 = vpop.f32.mrf.mxu0
        %v683 = vadd.f32 %v612, %v682
        %684 = vmatmul.f32.gmra.mxu0 %v472
        %v685 = vpop.f32.mrf.mxu0
        %v686 = vadd.f32 %v615, %v685
        %687 = vdwg.mxu0
        %688 = vmatpush.msra.mxu0 %v541
        %689 = vmatpush.msra.mxu0 %v540
        %690 = vmatpush.msra.mxu0 %v539
        %691 = vmatpush.msra.mxu0 %v538
        %692 = vmatpush.msra.mxu0 %v537
        %693 = vmatpush.msra.mxu0 %v536
        %694 = vmatpush.msra.mxu0 %v535
        %695 = vmatpush.msra.mxu0 %v534
        %696 = vmatpush.msra.mxu0 %v533
        %697 = vmatpush.msra.mxu0 %v532
        %698 = vmatpush.msra.mxu0 %v531
        %699 = vmatpush.msra.mxu0 %v530
        %700 = vmatpush.msra.mxu0 %v529
        %701 = vmatpush.msra.mxu0 %v528
        %702 = vmatpush.msra.mxu0 %v527
        %703 = vmatpush.msra.mxu0 %v526
        %704 = vmatmul.f32.gmra.mxu0 %v476
        %v705 = vpop.f32.mrf.mxu0
        %v706 = vadd.f32 %v635, %v705
        %707 = vmatmul.f32.gmra.mxu0 %v477
        %v708 = vpop.f32.mrf.mxu0
        %v709 = vadd.f32 %v638, %v708
        %710 = vmatmul.f32.gmra.mxu0 %v478
        %v711 = vpop.f32.mrf.mxu0
        %v712 = vadd.f32 %v641, %v711
        %713 = vmatmul.f32.gmra.mxu0 %v479
        %v714 = vpop.f32.mrf.mxu0
        %v715 = vadd.f32 %v644, %v714
        %716 = vmatmul.f32.gmra.mxu0 %v480
        %v717 = vpop.f32.mrf.mxu0
        %v718 = vadd.f32 %v647, %v717
        %719 = vmatmul.f32.gmra.mxu0 %v481
        %v720 = vpop.f32.mrf.mxu0
        %v721 = vadd.f32 %v650, %v720
        %722 = vmatmul.f32.gmra.mxu0 %v482
        %v723 = vpop.f32.mrf.mxu0
        %v724 = vadd.f32 %v653, %v723
        %725 = vmatmul.f32.gmra.mxu0 %v483
        %v726 = vpop.f32.mrf.mxu0
        %v727 = vadd.f32 %v656, %v726
        %728 = vmatmul.f32.gmra.mxu0 %v484
        %v729 = vpop.f32.mrf.mxu0
        %v730 = vadd.f32 %v659, %v729
        %731 = vmatmul.f32.gmra.mxu0 %v485
        %v732 = vpop.f32.mrf.mxu0
        %v733 = vadd.f32 %v662, %v732
        %734 = vmatmul.f32.gmra.mxu0 %v486
        %v735 = vpop.f32.mrf.mxu0
        %v736 = vadd.f32 %v665, %v735
        %737 = vmatmul.f32.gmra.mxu0 %v487
        %v738 = vpop.f32.mrf.mxu0
        %v739 = vadd.f32 %v668, %v738
        %740 = vmatmul.f32.gmra.mxu0 %v488
        %v741 = vpop.f32.mrf.mxu0
        %v742 = vadd.f32 %v671, %v741
        %743 = vmatmul.f32.gmra.mxu0 %v489
        %v744 = vpop.f32.mrf.mxu0
        %v745 = vadd.f32 %v674, %v744
        %746 = vmatmul.f32.gmra.mxu0 %v490
        %v747 = vpop.f32.mrf.mxu0
        %v748 = vadd.f32 %v677, %v747
        %749 = vmatmul.f32.gmra.mxu0 %v491
        %v750 = vpop.f32.mrf.mxu0
        %v751 = vadd.f32 %v680, %v750
        %752 = vmatmul.f32.gmra.mxu0 %v492
        %v753 = vpop.f32.mrf.mxu0
        %v754 = vadd.f32 %v683, %v753
        %755 = vmatmul.f32.gmra.mxu0 %v493
        %v756 = vpop.f32.mrf.mxu0
        %v757 = vadd.f32 %v686, %v756
        %758 = vdwg.mxu0
        %v759 = vmax.f32 %v706, 0.0
        %v760 = vmax.f32 %v709, 0.0
        %v761 = vmax.f32 %v712, 0.0
        %v762 = vmax.f32 %v715, 0.0
        %v763 = vmax.f32 %v718, 0.0
        %v764 = vmax.f32 %v721, 0.0
        %v765 = vmax.f32 %v724, 0.0
        %v766 = vmax.f32 %v727, 0.0
        %v767 = vmax.f32 %v730, 0.0
        %v768 = vmax.f32 %v733, 0.0
        %v769 = vmax.f32 %v736, 0.0
        %v770 = vmax.f32 %v739, 0.0
        %v771 = vmax.f32 %v742, 0.0
        %v772 = vmax.f32 %v745, 0.0
        %v773 = vmax.f32 %v748, 0.0
        %v774 = vmax.f32 %v751, 0.0
        %v775 = vmax.f32 %v754, 0.0
        %v776 = vmax.f32 %v757, 0.0
        %777 = vst [vmem:[#allocation3] sm:$0xff] %v759
        %778 = vst [vmem:[#allocation3 + $0x8] sm:$0xff] %v760
        %779 = vst [vmem:[#allocation3 + $0x10] sm:$0xff] %v761
        %780 = vst [vmem:[#allocation3 + $0x18] sm:$0xff] %v762
        %781 = vst [vmem:[#allocation3 + $0x20] sm:$0xff] %v763
        %782 = vst [vmem:[#allocation3 + $0x28] sm:$0xff] %v764
        %783 = vst [vmem:[#allocation3 + $0x30] sm:$0xff] %v765
        %784 = vst [vmem:[#allocation3 + $0x38] sm:$0xff] %v766
        %785 = vst [vmem:[#allocation3 + $0x40] sm:$0xff] %v767
        %786 = vst [vmem:[#allocation3 + $0x48] sm:$0xff] %v768
        %787 = vst [vmem:[#allocation3 + $0x50] sm:$0xff] %v769
        %788 = vst [vmem:[#allocation3 + $0x58] sm:$0xff] %v770
        %789 = vst [vmem:[#allocation3 + $0x60] sm:$0xff] %v771
        %790 = vst [vmem:[#allocation3 + $0x68] sm:$0xff] %v772
        %791 = vst [vmem:[#allocation3 + $0x70] sm:$0xff] %v773
        %792 = vst [vmem:[#allocation3 + $0x78] sm:$0xff] %v774
        %793 = vst [vmem:[#allocation3 + $0x80] sm:$0xff] %v775
        %794 = vst [vmem:[#allocation3 + $0x88] sm:$0xff] %v776
        // Predicated region
        $region57: #{tpu_custom_call.1} parent=39 // pred_check
          %p795 = pneg %p293
        $region58: #{tpu_custom_call.1} parent=39 // pred_check_branch
          %797 = sbr.rel (%p795) target = $region60
        $region59: #{tpu_custom_call.1} parent=39 // pred_region
          %798 = vst [vmem:[#allocation3] sm:$0xff] 0.0
        $region60: #{tpu_custom_call.1} parent=39 // pred_fallthru
          _
        %p799 = scmp.eq.s32.totalorder %s28, 3
        // Predicated region
        $region61: #{tpu_custom_call.1} parent=39 // pred_check
          %p800 = pneg %p799
        $region62: #{tpu_custom_call.1} parent=39 // pred_check_branch
          %802 = sbr.rel (%p800) target = $region64
        $region63: #{tpu_custom_call.1} parent=39 // pred_region
          %s803 = scalar_lea.vmem [#allocation3], 136
          %804 = vst [vmem:[%s803] sm:$0xff] 0.0
        $region64: #{tpu_custom_call.1} parent=39 // pred_fallthru
          _
        %v805 = vld [vmem:[#allocation3] sm:$0xff]
        %v806 = vld [vmem:[#allocation3 + $0x8] sm:$0xff]
        %v807 = vld [vmem:[#allocation3 + $0x10] sm:$0xff]
        %v808 = vld [vmem:[#allocation3 + $0x18] sm:$0xff]
        %v809 = vld [vmem:[#allocation3 + $0x20] sm:$0xff]
        %v810 = vld [vmem:[#allocation3 + $0x28] sm:$0xff]
        %v811 = vld [vmem:[#allocation3 + $0x30] sm:$0xff]
        %v812 = vld [vmem:[#allocation3 + $0x38] sm:$0xff]
        %v813 = vld [vmem:[#allocation3 + $0x40] sm:$0xff]
        %v814 = vld [vmem:[#allocation3 + $0x48] sm:$0xff]
        %v815 = vld [vmem:[#allocation3 + $0x50] sm:$0xff]
        %v816 = vld [vmem:[#allocation3 + $0x58] sm:$0xff]
        %v817 = vld [vmem:[#allocation3 + $0x60] sm:$0xff]
        %v818 = vld [vmem:[#allocation3 + $0x68] sm:$0xff]
        %v819 = vld [vmem:[#allocation3 + $0x70] sm:$0xff]
        %v820 = vld [vmem:[#allocation3 + $0x78] sm:$0xff]
        %s821 = scalar_lea.vmem [#allocation3], 8
        %v822 = vld [vmem:[%s821] sm:$0xff]
        %v823 = vld [vmem:[%s821 + $0x8] sm:$0xff]
        %v824 = vld [vmem:[%s821 + $0x10] sm:$0xff]
        %v825 = vld [vmem:[%s821 + $0x18] sm:$0xff]
        %v826 = vld [vmem:[%s821 + $0x20] sm:$0xff]
        %v827 = vld [vmem:[%s821 + $0x28] sm:$0xff]
        %v828 = vld [vmem:[%s821 + $0x30] sm:$0xff]
        %v829 = vld [vmem:[%s821 + $0x38] sm:$0xff]
        %v830 = vld [vmem:[%s821 + $0x40] sm:$0xff]
        %v831 = vld [vmem:[%s821 + $0x48] sm:$0xff]
        %v832 = vld [vmem:[%s821 + $0x50] sm:$0xff]
        %v833 = vld [vmem:[%s821 + $0x58] sm:$0xff]
        %v834 = vld [vmem:[%s821 + $0x60] sm:$0xff]
        %v835 = vld [vmem:[%s821 + $0x68] sm:$0xff]
        %v836 = vld [vmem:[%s821 + $0x70] sm:$0xff]
        %v837 = vld [vmem:[%s821 + $0x78] sm:$0xff]
        %s838 = scalar_lea.vmem [#allocation3], 16
        %v839 = vld [vmem:[%s838] sm:$0xff]
        %v840 = vld [vmem:[%s838 + $0x8] sm:$0xff]
        %v841 = vld [vmem:[%s838 + $0x10] sm:$0xff]
        %v842 = vld [vmem:[%s838 + $0x18] sm:$0xff]
        %v843 = vld [vmem:[%s838 + $0x20] sm:$0xff]
        %v844 = vld [vmem:[%s838 + $0x28] sm:$0xff]
        %v845 = vld [vmem:[%s838 + $0x30] sm:$0xff]
        %v846 = vld [vmem:[%s838 + $0x38] sm:$0xff]
        %v847 = vld [vmem:[%s838 + $0x40] sm:$0xff]
        %v848 = vld [vmem:[%s838 + $0x48] sm:$0xff]
        %v849 = vld [vmem:[%s838 + $0x50] sm:$0xff]
        %v850 = vld [vmem:[%s838 + $0x58] sm:$0xff]
        %v851 = vld [vmem:[%s838 + $0x60] sm:$0xff]
        %v852 = vld [vmem:[%s838 + $0x68] sm:$0xff]
        %v853 = vld [vmem:[%s838 + $0x70] sm:$0xff]
        %v854 = vld [vmem:[%s838 + $0x78] sm:$0xff]
        %v855 = vld [vmem:[#allocation9] sm:$0xff]
        %v856 = vld [vmem:[#allocation9 + $0x8] sm:$0xff]
        %v857 = vld [vmem:[#allocation9 + $0x10] sm:$0xff]
        %v858 = vld [vmem:[#allocation9 + $0x18] sm:$0xff]
        %v859 = vld [vmem:[#allocation9 + $0x20] sm:$0xff]
        %v860 = vld [vmem:[#allocation9 + $0x28] sm:$0xff]
        %v861 = vld [vmem:[#allocation9 + $0x30] sm:$0xff]
        %v862 = vld [vmem:[#allocation9 + $0x38] sm:$0xff]
        %v863 = vld [vmem:[#allocation9 + $0x40] sm:$0xff]
        %v864 = vld [vmem:[#allocation9 + $0x48] sm:$0xff]
        %v865 = vld [vmem:[#allocation9 + $0x50] sm:$0xff]
        %v866 = vld [vmem:[#allocation9 + $0x58] sm:$0xff]
        %v867 = vld [vmem:[#allocation9 + $0x60] sm:$0xff]
        %v868 = vld [vmem:[#allocation9 + $0x68] sm:$0xff]
        %v869 = vld [vmem:[#allocation9 + $0x70] sm:$0xff]
        %v870 = vld [vmem:[#allocation9 + $0x78] sm:$0xff]
        %v871 = vld [vmem:[#allocation9 + $0x80] sm:$0xff]
        %v872 = vld [vmem:[#allocation9 + $0x88] sm:$0xff]
        %v873 = vld [vmem:[#allocation9 + $0x90] sm:$0xff]
        %v874 = vld [vmem:[#allocation9 + $0x98] sm:$0xff]
        %v875 = vld [vmem:[#allocation9 + $0xa0] sm:$0xff]
        %v876 = vld [vmem:[#allocation9 + $0xa8] sm:$0xff]
        %v877 = vld [vmem:[#allocation9 + $0xb0] sm:$0xff]
        %v878 = vld [vmem:[#allocation9 + $0xb8] sm:$0xff]
        %v879 = vld [vmem:[#allocation9 + $0xc0] sm:$0xff]
        %v880 = vld [vmem:[#allocation9 + $0xc8] sm:$0xff]
        %v881 = vld [vmem:[#allocation9 + $0xd0] sm:$0xff]
        %v882 = vld [vmem:[#allocation9 + $0xd8] sm:$0xff]
        %v883 = vld [vmem:[#allocation9 + $0xe0] sm:$0xff]
        %v884 = vld [vmem:[#allocation9 + $0xe8] sm:$0xff]
        %v885 = vld [vmem:[#allocation9 + $0xf0] sm:$0xff]
        %v886 = vld [vmem:[#allocation9 + $0xf8] sm:$0xff]
        %v887 = vld [vmem:[#allocation9 + $0x100] sm:$0xff]
        %v888 = vld [vmem:[#allocation9 + $0x108] sm:$0xff]
        %v889 = vld [vmem:[#allocation9 + $0x110] sm:$0xff]
        %v890 = vld [vmem:[#allocation9 + $0x118] sm:$0xff]
        %v891 = vld [vmem:[#allocation9 + $0x120] sm:$0xff]
        %v892 = vld [vmem:[#allocation9 + $0x128] sm:$0xff]
        %v893 = vld [vmem:[#allocation9 + $0x130] sm:$0xff]
        %v894 = vld [vmem:[#allocation9 + $0x138] sm:$0xff]
        %v895 = vld [vmem:[#allocation9 + $0x140] sm:$0xff]
        %v896 = vld [vmem:[#allocation9 + $0x148] sm:$0xff]
        %v897 = vld [vmem:[#allocation9 + $0x150] sm:$0xff]
        %v898 = vld [vmem:[#allocation9 + $0x158] sm:$0xff]
        %v899 = vld [vmem:[#allocation9 + $0x160] sm:$0xff]
        %v900 = vld [vmem:[#allocation9 + $0x168] sm:$0xff]
        %v901 = vld [vmem:[#allocation9 + $0x170] sm:$0xff]
        %v902 = vld [vmem:[#allocation9 + $0x178] sm:$0xff]
        %903 = vmatpush.msra.mxu0 %v870
        %904 = vmatpush.msra.mxu0 %v869
        %905 = vmatpush.msra.mxu0 %v868
        %906 = vmatpush.msra.mxu0 %v867
        %907 = vmatpush.msra.mxu0 %v866
        %908 = vmatpush.msra.mxu0 %v865
        %909 = vmatpush.msra.mxu0 %v864
        %910 = vmatpush.msra.mxu0 %v863
        %911 = vmatpush.msra.mxu0 %v862
        %912 = vmatpush.msra.mxu0 %v861
        %913 = vmatpush.msra.mxu0 %v860
        %914 = vmatpush.msra.mxu0 %v859
        %915 = vmatpush.msra.mxu0 %v858
        %916 = vmatpush.msra.mxu0 %v857
        %917 = vmatpush.msra.mxu0 %v856
        %918 = vmatpush.msra.mxu0 %v855
        %919 = vmatmul.f32.gmra.mxu0 %v805
        %v920 = vpop.f32.mrf.mxu0
        %v921 = vadd.f32 0.0, %v920
        %922 = vmatmul.f32.gmra.mxu0 %v806
        %v923 = vpop.f32.mrf.mxu0
        %v924 = vadd.f32 0.0, %v923
        %925 = vmatmul.f32.gmra.mxu0 %v807
        %v926 = vpop.f32.mrf.mxu0
        %v927 = vadd.f32 0.0, %v926
        %928 = vmatmul.f32.gmra.mxu0 %v808
        %v929 = vpop.f32.mrf.mxu0
        %v930 = vadd.f32 0.0, %v929
        %931 = vmatmul.f32.gmra.mxu0 %v809
        %v932 = vpop.f32.mrf.mxu0
        %v933 = vadd.f32 0.0, %v932
        %934 = vmatmul.f32.gmra.mxu0 %v810
        %v935 = vpop.f32.mrf.mxu0
        %v936 = vadd.f32 0.0, %v935
        %937 = vmatmul.f32.gmra.mxu0 %v811
        %v938 = vpop.f32.mrf.mxu0
        %v939 = vadd.f32 0.0, %v938
        %940 = vmatmul.f32.gmra.mxu0 %v812
        %v941 = vpop.f32.mrf.mxu0
        %v942 = vadd.f32 0.0, %v941
        %943 = vmatmul.f32.gmra.mxu0 %v813
        %v944 = vpop.f32.mrf.mxu0
        %v945 = vadd.f32 0.0, %v944
        %946 = vmatmul.f32.gmra.mxu0 %v814
        %v947 = vpop.f32.mrf.mxu0
        %v948 = vadd.f32 0.0, %v947
        %949 = vmatmul.f32.gmra.mxu0 %v815
        %v950 = vpop.f32.mrf.mxu0
        %v951 = vadd.f32 0.0, %v950
        %952 = vmatmul.f32.gmra.mxu0 %v816
        %v953 = vpop.f32.mrf.mxu0
        %v954 = vadd.f32 0.0, %v953
        %955 = vmatmul.f32.gmra.mxu0 %v817
        %v956 = vpop.f32.mrf.mxu0
        %v957 = vadd.f32 0.0, %v956
        %958 = vmatmul.f32.gmra.mxu0 %v818
        %v959 = vpop.f32.mrf.mxu0
        %v960 = vadd.f32 0.0, %v959
        %961 = vmatmul.f32.gmra.mxu0 %v819
        %v962 = vpop.f32.mrf.mxu0
        %v963 = vadd.f32 0.0, %v962
        %964 = vmatmul.f32.gmra.mxu0 %v820
        %v965 = vpop.f32.mrf.mxu0
        %v966 = vadd.f32 0.0, %v965
        %967 = vdwg.mxu0
        %968 = vmatpush.msra.mxu0 %v886
        %969 = vmatpush.msra.mxu0 %v885
        %970 = vmatpush.msra.mxu0 %v884
        %971 = vmatpush.msra.mxu0 %v883
        %972 = vmatpush.msra.mxu0 %v882
        %973 = vmatpush.msra.mxu0 %v881
        %974 = vmatpush.msra.mxu0 %v880
        %975 = vmatpush.msra.mxu0 %v879
        %976 = vmatpush.msra.mxu0 %v878
        %977 = vmatpush.msra.mxu0 %v877
        %978 = vmatpush.msra.mxu0 %v876
        %979 = vmatpush.msra.mxu0 %v875
        %980 = vmatpush.msra.mxu0 %v874
        %981 = vmatpush.msra.mxu0 %v873
        %982 = vmatpush.msra.mxu0 %v872
        %983 = vmatpush.msra.mxu0 %v871
        %984 = vmatmul.f32.gmra.mxu0 %v822
        %v985 = vpop.f32.mrf.mxu0
        %v986 = vadd.f32 %v921, %v985
        %987 = vmatmul.f32.gmra.mxu0 %v823
        %v988 = vpop.f32.mrf.mxu0
        %v989 = vadd.f32 %v924, %v988
        %990 = vmatmul.f32.gmra.mxu0 %v824
        %v991 = vpop.f32.mrf.mxu0
        %v992 = vadd.f32 %v927, %v991
        %993 = vmatmul.f32.gmra.mxu0 %v825
        %v994 = vpop.f32.mrf.mxu0
        %v995 = vadd.f32 %v930, %v994
        %996 = vmatmul.f32.gmra.mxu0 %v826
        %v997 = vpop.f32.mrf.mxu0
        %v998 = vadd.f32 %v933, %v997
        %999 = vmatmul.f32.gmra.mxu0 %v827
        %v1000 = vpop.f32.mrf.mxu0
        %v1001 = vadd.f32 %v936, %v1000
        %1002 = vmatmul.f32.gmra.mxu0 %v828
        %v1003 = vpop.f32.mrf.mxu0
        %v1004 = vadd.f32 %v939, %v1003
        %1005 = vmatmul.f32.gmra.mxu0 %v829
        %v1006 = vpop.f32.mrf.mxu0
        %v1007 = vadd.f32 %v942, %v1006
        %1008 = vmatmul.f32.gmra.mxu0 %v830
        %v1009 = vpop.f32.mrf.mxu0
        %v1010 = vadd.f32 %v945, %v1009
        %1011 = vmatmul.f32.gmra.mxu0 %v831
        %v1012 = vpop.f32.mrf.mxu0
        %v1013 = vadd.f32 %v948, %v1012
        %1014 = vmatmul.f32.gmra.mxu0 %v832
        %v1015 = vpop.f32.mrf.mxu0
        %v1016 = vadd.f32 %v951, %v1015
        %1017 = vmatmul.f32.gmra.mxu0 %v833
        %v1018 = vpop.f32.mrf.mxu0
        %v1019 = vadd.f32 %v954, %v1018
        %1020 = vmatmul.f32.gmra.mxu0 %v834
        %v1021 = vpop.f32.mrf.mxu0
        %v1022 = vadd.f32 %v957, %v1021
        %1023 = vmatmul.f32.gmra.mxu0 %v835
        %v1024 = vpop.f32.mrf.mxu0
        %v1025 = vadd.f32 %v960, %v1024
        %1026 = vmatmul.f32.gmra.mxu0 %v836
        %v1027 = vpop.f32.mrf.mxu0
        %v1028 = vadd.f32 %v963, %v1027
        %1029 = vmatmul.f32.gmra.mxu0 %v837
        %v1030 = vpop.f32.mrf.mxu0
        %v1031 = vadd.f32 %v966, %v1030
        %1032 = vdwg.mxu0
        %1033 = vmatpush.msra.mxu0 %v902
        %1034 = vmatpush.msra.mxu0 %v901
        %1035 = vmatpush.msra.mxu0 %v900
        %1036 = vmatpush.msra.mxu0 %v899
        %1037 = vmatpush.msra.mxu0 %v898
        %1038 = vmatpush.msra.mxu0 %v897
        %1039 = vmatpush.msra.mxu0 %v896
        %1040 = vmatpush.msra.mxu0 %v895
        %1041 = vmatpush.msra.mxu0 %v894
        %1042 = vmatpush.msra.mxu0 %v893
        %1043 = vmatpush.msra.mxu0 %v892
        %1044 = vmatpush.msra.mxu0 %v891
        %1045 = vmatpush.msra.mxu0 %v890
        %1046 = vmatpush.msra.mxu0 %v889
        %1047 = vmatpush.msra.mxu0 %v888
        %1048 = vmatpush.msra.mxu0 %v887
        %1049 = vmatmul.f32.gmra.mxu0 %v839
        %v1050 = vpop.f32.mrf.mxu0
        %v1051 = vadd.f32 %v986, %v1050
        %1052 = vmatmul.f32.gmra.mxu0 %v840
        %v1053 = vpop.f32.mrf.mxu0
        %v1054 = vadd.f32 %v989, %v1053
        %1055 = vmatmul.f32.gmra.mxu0 %v841
        %v1056 = vpop.f32.mrf.mxu0
        %v1057 = vadd.f32 %v992, %v1056
        %1058 = vmatmul.f32.gmra.mxu0 %v842
        %v1059 = vpop.f32.mrf.mxu0
        %v1060 = vadd.f32 %v995, %v1059
        %1061 = vmatmul.f32.gmra.mxu0 %v843
        %v1062 = vpop.f32.mrf.mxu0
        %v1063 = vadd.f32 %v998, %v1062
        %1064 = vmatmul.f32.gmra.mxu0 %v844
        %v1065 = vpop.f32.mrf.mxu0
        %v1066 = vadd.f32 %v1001, %v1065
        %1067 = vmatmul.f32.gmra.mxu0 %v845
        %v1068 = vpop.f32.mrf.mxu0
        %v1069 = vadd.f32 %v1004, %v1068
        %1070 = vmatmul.f32.gmra.mxu0 %v846
        %v1071 = vpop.f32.mrf.mxu0
        %v1072 = vadd.f32 %v1007, %v1071
        %1073 = vmatmul.f32.gmra.mxu0 %v847
        %v1074 = vpop.f32.mrf.mxu0
        %v1075 = vadd.f32 %v1010, %v1074
        %1076 = vmatmul.f32.gmra.mxu0 %v848
        %v1077 = vpop.f32.mrf.mxu0
        %v1078 = vadd.f32 %v1013, %v1077
        %1079 = vmatmul.f32.gmra.mxu0 %v849
        %v1080 = vpop.f32.mrf.mxu0
        %v1081 = vadd.f32 %v1016, %v1080
        %1082 = vmatmul.f32.gmra.mxu0 %v850
        %v1083 = vpop.f32.mrf.mxu0
        %v1084 = vadd.f32 %v1019, %v1083
        %1085 = vmatmul.f32.gmra.mxu0 %v851
        %v1086 = vpop.f32.mrf.mxu0
        %v1087 = vadd.f32 %v1022, %v1086
        %1088 = vmatmul.f32.gmra.mxu0 %v852
        %v1089 = vpop.f32.mrf.mxu0
        %v1090 = vadd.f32 %v1025, %v1089
        %1091 = vmatmul.f32.gmra.mxu0 %v853
        %v1092 = vpop.f32.mrf.mxu0
        %v1093 = vadd.f32 %v1028, %v1092
        %1094 = vmatmul.f32.gmra.mxu0 %v854
        %v1095 = vpop.f32.mrf.mxu0
        %v1096 = vadd.f32 %v1031, %v1095
        %1097 = vdwg.mxu0
        %v1098 = vld [vmem:[%s4] sm:$0x1]
        %v1100 = vperm.slane %v1098, 0
        %v1102 = vadd.f32 %v1051, %v1100
        %v1103 = vadd.f32 %v1054, %v1100
        %v1104 = vadd.f32 %v1057, %v1100
        %v1105 = vadd.f32 %v1060, %v1100
        %v1106 = vadd.f32 %v1063, %v1100
        %v1107 = vadd.f32 %v1066, %v1100
        %v1108 = vadd.f32 %v1069, %v1100
        %v1109 = vadd.f32 %v1072, %v1100
        %v1110 = vadd.f32 %v1075, %v1100
        %v1111 = vadd.f32 %v1078, %v1100
        %v1112 = vadd.f32 %v1081, %v1100
        %v1113 = vadd.f32 %v1084, %v1100
        %v1114 = vadd.f32 %v1087, %v1100
        %v1115 = vadd.f32 %v1090, %v1100
        %v1116 = vadd.f32 %v1093, %v1100
        %v1117 = vadd.f32 %v1096, %v1100
        %s1118 = scalar_lea.vmem %s254, %s432 [#allocation4]
        %v1119 = vld [vmem:[%s1118] sm:$0xff]
        %v1120 = vld [vmem:[%s1118 + $0x8] sm:$0xff]
        %v1121 = vld [vmem:[%s1118 + $0x10] sm:$0xff]
        %v1122 = vld [vmem:[%s1118 + $0x18] sm:$0xff]
        %v1123 = vld [vmem:[%s1118 + $0x20] sm:$0xff]
        %v1124 = vld [vmem:[%s1118 + $0x28] sm:$0xff]
        %v1125 = vld [vmem:[%s1118 + $0x30] sm:$0xff]
        %v1126 = vld [vmem:[%s1118 + $0x38] sm:$0xff]
        %v1127 = vld [vmem:[%s1118 + $0x40] sm:$0xff]
        %v1128 = vld [vmem:[%s1118 + $0x48] sm:$0xff]
        %v1129 = vld [vmem:[%s1118 + $0x50] sm:$0xff]
        %v1130 = vld [vmem:[%s1118 + $0x58] sm:$0xff]
        %v1131 = vld [vmem:[%s1118 + $0x60] sm:$0xff]
        %v1132 = vld [vmem:[%s1118 + $0x68] sm:$0xff]
        %v1133 = vld [vmem:[%s1118 + $0x70] sm:$0xff]
        %v1134 = vld [vmem:[%s1118 + $0x78] sm:$0xff]
        %v1135 = vadd.f32 %v1102, %v1119
        %v1136 = vadd.f32 %v1103, %v1120
        %v1137 = vadd.f32 %v1104, %v1121
        %v1138 = vadd.f32 %v1105, %v1122
        %v1139 = vadd.f32 %v1106, %v1123
        %v1140 = vadd.f32 %v1107, %v1124
        %v1141 = vadd.f32 %v1108, %v1125
        %v1142 = vadd.f32 %v1109, %v1126
        %v1143 = vadd.f32 %v1110, %v1127
        %v1144 = vadd.f32 %v1111, %v1128
        %v1145 = vadd.f32 %v1112, %v1129
        %v1146 = vadd.f32 %v1113, %v1130
        %v1147 = vadd.f32 %v1114, %v1131
        %v1148 = vadd.f32 %v1115, %v1132
        %v1149 = vadd.f32 %v1116, %v1133
        %v1150 = vadd.f32 %v1117, %v1134
        %v1151 = vmax.f32 %v1135, 0.0
        %v1152 = vmax.f32 %v1136, 0.0
        %v1153 = vmax.f32 %v1137, 0.0
        %v1154 = vmax.f32 %v1138, 0.0
        %v1155 = vmax.f32 %v1139, 0.0
        %v1156 = vmax.f32 %v1140, 0.0
        %v1157 = vmax.f32 %v1141, 0.0
        %v1158 = vmax.f32 %v1142, 0.0
        %v1159 = vmax.f32 %v1143, 0.0
        %v1160 = vmax.f32 %v1144, 0.0
        %v1161 = vmax.f32 %v1145, 0.0
        %v1162 = vmax.f32 %v1146, 0.0
        %v1163 = vmax.f32 %v1147, 0.0
        %v1164 = vmax.f32 %v1148, 0.0
        %v1165 = vmax.f32 %v1149, 0.0
        %v1166 = vmax.f32 %v1150, 0.0
        %1167 = vst [vmem:[%s291] sm:$0xff] %v1151
        %1168 = vst [vmem:[%s291 + $0x8] sm:$0xff] %v1152
        %1169 = vst [vmem:[%s291 + $0x10] sm:$0xff] %v1153
        %1170 = vst [vmem:[%s291 + $0x18] sm:$0xff] %v1154
        %1171 = vst [vmem:[%s291 + $0x20] sm:$0xff] %v1155
        %1172 = vst [vmem:[%s291 + $0x28] sm:$0xff] %v1156
        %1173 = vst [vmem:[%s291 + $0x30] sm:$0xff] %v1157
        %1174 = vst [vmem:[%s291 + $0x38] sm:$0xff] %v1158
        %1175 = vst [vmem:[%s291 + $0x40] sm:$0xff] %v1159
        %1176 = vst [vmem:[%s291 + $0x48] sm:$0xff] %v1160
        %1177 = vst [vmem:[%s291 + $0x50] sm:$0xff] %v1161
        %1178 = vst [vmem:[%s291 + $0x58] sm:$0xff] %v1162
        %1179 = vst [vmem:[%s291 + $0x60] sm:$0xff] %v1163
        %1180 = vst [vmem:[%s291 + $0x68] sm:$0xff] %v1164
        %1181 = vst [vmem:[%s291 + $0x70] sm:$0xff] %v1165
        %1182 = vst [vmem:[%s291 + $0x78] sm:$0xff] %v1166
        %s1183 = sand.u32 %s155, 1
        %s1184 = scalar_lea.sflag [#allocation6], %s1183
        %s1185 = sand.u32 %s155, 1
        %s1186 = smul.addr %s1185, 128
        %s1187 = scalar_lea.vmem [#allocation10], %s1186
        // Predicated region
        $region65: #{tpu_custom_call.1} parent=39 // pred_check
          %p1188 = pneg %p165
        $region66: #{tpu_custom_call.1} parent=39 // pred_check_branch
          %1190 = sbr.rel (%p1188) target = $region68
        $region67: #{tpu_custom_call.1} parent=39 // pred_region
          %s1191 = smul.u32 16, %s28
          %1193 = vsyncadd %s1184, 0
          %s1194 = smul.addr %s27, 64
          %s1195 = sadd.s32 %s1191, %s1194
          %s1196 = smul.addr %s1195, 8
          %s1197 = scalar_lea.hbm %s5, %s1196
          %s1198 = sshll.u32 %s1187, 4
          %s1199 = int_to_ptr.vmem [resolvable:$true] %s1198
          %s1200 = sshll.u32 %s1197, 4
          %s1201 = int_to_ptr.hbm [resolvable:$true] %s1200
          %1206 = dma.vmem_to_hbm [thread:$0]  %s1199, 2048, %s1201, %s1184, 128, 128, 8
        $region68: #{tpu_custom_call.1} parent=39 // pred_fallthru
          _
      $region40: #{tpu_custom_call.1} parent=5 // pred_fallthru
        _
      %p1207 = scmp.le.s32.totalorder 2, %s18
      // Predicated region
      $region69: #{tpu_custom_call.1} parent=5 // pred_check
        %p1208 = pneg %p1207
      $region70: #{tpu_custom_call.1} parent=5 // pred_check_branch
        %1210 = sbr.rel (%p1208) target = $region72
      $region71: #{tpu_custom_call.1} parent=5 // pred_region
        %s1211 = ssub.s32 %s18, 2
        // Predicated region
        $region73: #{tpu_custom_call.1} parent=71 // pred_check
          %p1212 = pneg %p171
        $region74: #{tpu_custom_call.1} parent=71 // pred_check_branch
          %1214 = sbr.rel (%p1212) target = $region76
        $region75: #{tpu_custom_call.1} parent=71 // pred_region
          %s1215 = sand.u32 %s156, 1
          %s1216 = scalar_lea.sflag [#allocation6], %s1215
          %s1217 = sand.u32 %s156, 1
          %s1218 = smul.addr %s1217, 128
          %s1219 = scalar_lea.vmem [#allocation10], %s1218
          %1221 = dma.done %s1216, 2048
        $region76: #{tpu_custom_call.1} parent=71 // pred_fallthru
          _
      $region72: #{tpu_custom_call.1} parent=5 // pred_fallthru
        _
    $region6: #{tpu_custom_call.1} parent=1 // loop_footer
      %s22 = sadd.s32 1, %s18
    $region7: #{tpu_custom_call.1} parent=1 // loop_footer_branch
      %17 = sbr.rel target = $region3
    $region8: #{tpu_custom_call.1} parent=1 // loop_exit
      _
    %1222 = vsyncpa [#allocation5], 1
    %s1223 = scalar_lea.sflag [#allocation5], 1
    %1224 = vsyncpa %s1223, 1
    %1225 = vsyncpa [#allocation8], 1
    %1226 = vsyncpa [#allocation6], 1
    %s1227 = scalar_lea.sflag [#allocation6], 1
    %1228 = vsyncpa %s1227, 1

</llo_original>
